<compile_context>
chip_gen: v5e
topology: v5e:2x2
jax: 0.10.0
libtpu: 0.0.40
codegen_flags: <defaults>
</compile_context>

<pallas_src>
import functools

import jax
import jax.numpy as jnp
from jax.experimental import pallas as pl
from jax.experimental.pallas import tpu as pltpu


# ------------------------------ tiling helper -------------------------------

def _pick_tile(dim, cap, align):
    """Largest tile <= cap that divides dim and is `align`-aligned, else full dim.

    Callers pad lane dims to a multiple of 128 beforehand, so the full-dim
    fallback only triggers for small / already-resident dims.
    """
    if dim <= cap:
        return dim
    t = (cap // align) * align
    while t >= align:
        if dim % t == 0:
            return t
        t -= align
    return dim


# ----------------------------- Pallas kernels ------------------------------

def _ln_dense_kernel(x_ref, g_ref, bln_ref, w_ref, b_ref, o_ref, xn_ref, *, gelu):
    """Fused LayerNorm + matmul (+ optional GELU).  Grid (M, N), N 'arbitrary'.

    The LN (mean/var/rsqrt + bf16 cast) runs only on the first N tile of each
    row block and is cached in a bf16 VMEM scratch, so it is not recomputed
    for every weight tile of the LM head / 3C / 4C projections.
    """
    @pl.when(pl.program_id(1) == 0)
    def _():
        x = x_ref[...]                                         # (tm, C) f32
        mu = jnp.mean(x, axis=-1, keepdims=True)
        var = jnp.mean(jnp.square(x - mu), axis=-1, keepdims=True)
        xn = (x - mu) * jax.lax.rsqrt(var + 1e-5) * g_ref[...] + bln_ref[...]
        xn_ref[...] = xn.astype(xn_ref.dtype)                  # bf16 scratch

    acc = jnp.dot(xn_ref[...], w_ref[...].astype(jnp.bfloat16),
                  preferred_element_type=jnp.float32)           # MXU, f32 acc
    acc = acc + b_ref[...]
    if gelu:
        acc = jax.nn.gelu(acc, approximate=True)                # GPT-2 "gelu_new"
    o_ref[...] = acc.astype(o_ref.dtype)


def _dense_residual_kernel(x_ref, w_ref, b_ref, r_ref, o_ref):
    """K-tiled matmul accumulating directly into the resident f32 output block;
    bias + residual fused at finalize.  Grid (M, N, K), K 'arbitrary'."""
    @pl.when(pl.program_id(2) == 0)
    def _():
        o_ref[...] = jnp.zeros_like(o_ref)

    o_ref[...] += jnp.dot(x_ref[...].astype(jnp.bfloat16),
                          w_ref[...].astype(jnp.bfloat16),
                          preferred_element_type=jnp.float32)

    @pl.when(pl.program_id(2) == pl.num_programs(2) - 1)
    def _():
        o_ref[...] += b_ref[...] + r_ref[...]


def _attn_kernel(*refs, scale, has_past):
    """Cached causal attention for one (batch, head) grid point.

    q/kn/vn/o blocks: (1, 1, T, Dh); past K/V blocks: (1, 1, P, Dh).
    Softmax math stays in f32 (v5e-safe); matmul operands are bf16.
    """
    if has_past:
        q_ref, kn_ref, vn_ref, kp_ref, vp_ref, o_ref = refs
    else:
        q_ref, kn_ref, vn_ref, o_ref = refs

    t = q_ref.shape[2]
    nt_dims = (((1,), (1,)), ((), ()))   # A @ B^T (contract Dh of both)
    nn_dims = (((1,), (0,)), ((), ()))   # A @ B

    q = (q_ref[0, 0] * scale).astype(jnp.bfloat16)   # scale folded into q once
    kn = kn_ref[0, 0].astype(jnp.bfloat16)
    vn = vn_ref[0, 0].astype(jnp.bfloat16)

    s_new = jax.lax.dot_general(q, kn, nt_dims,
                                preferred_element_type=jnp.float32)   # (T, T)
    q_pos = jax.lax.broadcasted_iota(jnp.int32, (t, t), 0)
    k_pos = jax.lax.broadcasted_iota(jnp.int32, (t, t), 1)
    s_new = jnp.where(k_pos <= q_pos, s_new, -1e30)                   # causal
    m = jnp.max(s_new, axis=-1, keepdims=True)

    if has_past:
        kp = kp_ref[0, 0].astype(jnp.bfloat16)
        vp = vp_ref[0, 0].astype(jnp.bfloat16)
        # TODO(synk): stage [K_past;K_new] in a VMEM scratch to fuse into a
        #             single QK^T / PV matmul per grid point.
        s_past = jax.lax.dot_general(q, kp, nt_dims,
                                     preferred_element_type=jnp.float32)  # (T, P)
        m = jnp.maximum(m, jnp.max(s_past, axis=-1, keepdims=True))
        e_past = jnp.exp(s_past - m)
        e_new = jnp.exp(s_new - m)
        denom = (jnp.sum(e_past, axis=-1, keepdims=True)
                 + jnp.sum(e_new, axis=-1, keepdims=True))
        o = jax.lax.dot_general(e_past.astype(jnp.bfloat16), vp, nn_dims,
                                preferred_element_type=jnp.float32)
        o = o + jax.lax.dot_general(e_new.astype(jnp.bfloat16), vn, nn_dims,
                                    preferred_element_type=jnp.float32)
    else:
        e_new = jnp.exp(s_new - m)
        denom = jnp.sum(e_new, axis=-1, keepdims=True)
        o = jax.lax.dot_general(e_new.astype(jnp.bfloat16), vn, nn_dims,
                                preferred_element_type=jnp.float32)

    o_ref[0, 0] = (o / denom).astype(o_ref.dtype)    # exact divide (accuracy)


# ----------------------------- Pallas wrappers ------------------------------

def ln_dense(x, g, bln, w, b, *, gelu=False, out_dtype=jnp.float32,
             tm_cap=256, tn_cap=512):
    """Fused LayerNorm + dense (+GELU).  Grid (M//tm, N//tn), full-K blocks.

    N is padded to a multiple of 128 when needed (e.g. GPT-2 vocab 50257) so
    the weight block never falls back to the full width.
    """
    m, c = x.shape
    n = w.shape[1]
    n_out = n
    if n > 128 and n % 128 != 0:
        n_pad = pl.cdiv(n, 128) * 128
        w = jnp.pad(w, ((0, 0), (0, n_pad - n)))
        b = jnp.pad(b, ((0, n_pad - n),))
        n = n_pad

    tm = _pick_tile(m, tm_cap, 8)
    tn = _pick_tile(n, tn_cap, 128)
    grid = (m // tm, n // tn)
    kern = functools.partial(_ln_dense_kernel, gelu=gelu)

    out = pl.pallas_call(
        kern,
        out_shape=jax.ShapeDtypeStruct((m, n), out_dtype),
        grid=grid,
        in_specs=[
            pl.BlockSpec((tm, c), lambda i, j: (i, 0)),
            pl.BlockSpec((1, c), lambda i, j: (0, 0)),
            pl.BlockSpec((1, c), lambda i, j: (0, 0)),
            pl.BlockSpec((c, tn), lambda i, j: (0, j)),
            pl.BlockSpec((1, tn), lambda i, j: (0, j)),
        ],
        out_specs=pl.BlockSpec((tm, tn), lambda i, j: (i, j)),
        scratch_shapes=[pltpu.VMEM((tm, c), jnp.bfloat16)],     # cached LN rows
        compiler_params=pltpu.CompilerParams(
            dimension_semantics=("parallel", "arbitrary")),
    )(x, g.reshape(1, c), bln.reshape(1, c), w, b.reshape(1, n))

    if n_out != n:
        out = out[:, :n_out]
    return out


def dense_residual(x, w, b, residual, *, tm_cap=256, tn_cap=512, tk_cap=512):
    """K-tiled dense with fused bias + residual add.  Grid (M, N, K)."""
    m, k = x.shape
    n = w.shape[1]
    tm = _pick_tile(m, tm_cap, 8)
    tn = _pick_tile(n, tn_cap, 128)
    tk = _pick_tile(k, tk_cap, 128)
    grid = (m // tm, n // tn, k // tk)
    return pl.pallas_call(
        _dense_residual_kernel,
        out_shape=jax.ShapeDtypeStruct((m, n), jnp.float32),
        grid=grid,
        in_specs=[
            pl.BlockSpec((tm, tk), lambda i, j, kk: (i, kk)),
            pl.BlockSpec((tk, tn), lambda i, j, kk: (kk, j)),
            pl.BlockSpec((1, tn), lambda i, j, kk: (0, j)),
            pl.BlockSpec((tm, tn), lambda i, j, kk: (i, j)),
        ],
        out_specs=pl.BlockSpec((tm, tn), lambda i, j, kk: (i, j)),
        compiler_params=pltpu.CompilerParams(
            dimension_semantics=("parallel", "parallel", "arbitrary")),
    )(x, w, b.reshape(1, n), residual)


def attention(q, k_new, v_new, k_past, v_past, *, out_dtype=jnp.bfloat16):
    """Head-major cached causal attention.

    q/k_new/v_new: (B, H, T, Dh); k_past/v_past: (B, H, P, Dh).
    Grid (B, H), both axes parallel (v7x 2-TC sharding); per-head past blocks
    keep VMEM bounded without chunking for moderate P.
    """
    b, h, t, dh = q.shape
    p = k_past.shape[2]
    has_past = p > 0
    kern = functools.partial(_attn_kernel, scale=1.0 / (dh ** 0.5),
                             has_past=has_past)

    qkv_spec = pl.BlockSpec((1, 1, t, dh), lambda i, j: (i, j, 0, 0))
    in_specs = [qkv_spec, qkv_spec, qkv_spec]
    operands = [q, k_new, v_new]
    if has_past:
        past_spec = pl.BlockSpec((1, 1, p, dh), lambda i, j: (i, j, 0, 0))
        in_specs += [past_spec, past_spec]
        operands += [k_past, v_past]

    return pl.pallas_call(
        kern,
        out_shape=jax.ShapeDtypeStruct((b, h, t, dh), out_dtype),
        grid=(b, h),
        in_specs=in_specs,
        out_specs=pl.BlockSpec((1, 1, t, dh), lambda i, j: (i, j, 0, 0)),
        compiler_params=pltpu.CompilerParams(
            dimension_semantics=("parallel", "parallel")),
    )(*operands)


# ----------------------------- model definition -----------------------------

def init_params(key, *, vocab, max_pos, n_layer, n_head, head_dim):
    c = n_head * head_dim
    keys = jax.random.split(key, 4 + 6 * n_layer)
    # matmul weights stored in bf16 (MXU-native, half the weight DMA bytes);
    # LN params / biases / embeddings stay f32.
    p = {
        "wte": 0.02 * jax.random.normal(keys[0], (vocab, c), jnp.float32),
        "wpe": 0.02 * jax.random.normal(keys[1], (max_pos, c), jnp.float32),
        "lnf_g": jnp.ones((c,), jnp.float32),
        "lnf_b": jnp.zeros((c,), jnp.float32),
        "w_lm": (0.02 * jax.random.normal(keys[2], (c, vocab))).astype(jnp.bfloat16),
        "b_lm": jnp.zeros((vocab,), jnp.float32),
        "layers": [],
    }
    for l in range(n_layer):
        k0, k1, k2, k3 = keys[4 + 4 * l: 8 + 4 * l]
        p["layers"].append({
            "ln1_g": jnp.ones((c,), jnp.float32),
            "ln1_b": jnp.zeros((c,), jnp.float32),
            "w_qkv": (0.02 * jax.random.normal(k0, (c, 3 * c))).astype(jnp.bfloat16),
            "b_qkv": jnp.zeros((3 * c,), jnp.float32),
            "w_o": (0.02 * jax.random.normal(k1, (c, c))).astype(jnp.bfloat16),
            "b_o": jnp.zeros((c,), jnp.float32),
            "ln2_g": jnp.ones((c,), jnp.float32),
            "ln2_b": jnp.zeros((c,), jnp.float32),
            "w_fc": (0.02 * jax.random.normal(k2, (c, 4 * c))).astype(jnp.bfloat16),
            "b_fc": jnp.zeros((4 * c,), jnp.float32),
            "w_proj": (0.02 * jax.random.normal(k3, (4 * c, c))).astype(jnp.bfloat16),
            "b_proj": jnp.zeros((c,), jnp.float32),
        })
    return p


def onnx_decoder_forward(params, input_ids, attns, values):
    """Mirrors ONNXDecoder.forward: (input_ids, past_keys, past_values) ->
    (logits, new_stacked_keys, new_stacked_values)."""
    n_layer, b, n_head, past_len, head_dim = attns.shape
    t = input_ids.shape[1]
    c = n_head * head_dim
    vocab = params["w_lm"].shape[1]

    # embedding lookup + positional embedding (glue, plain JAX gather)
    x = params["wte"][input_ids] + params["wpe"][past_len:past_len + t][None]
    x = x.reshape(b * t, c)

    new_k_list, new_v_list = [], []
    for l in range(n_layer):
        lp = params["layers"][l]

        # fused LN1 + QKV projection (f32 out: feeds the f32 cache contract)
        qkv = ln_dense(x, lp["ln1_g"], lp["ln1_b"], lp["w_qkv"], lp["b_qkv"])
        qkv = qkv.reshape(b, t, 3, n_head, head_dim)
        q = qkv[:, :, 0].transpose(0, 2, 1, 3)        # (B, H, T, Dh)
        k_new = qkv[:, :, 1].transpose(0, 2, 1, 3)    # already cache layout
        v_new = qkv[:, :, 2].transpose(0, 2, 1, 3)
        new_k_list.append(k_new)
        new_v_list.append(v_new)

        # cached causal attention; past cache read directly (no per-layer concat)
        a = attention(q, k_new, v_new, attns[l], values[l])   # (B,H,T,Dh) bf16
        a = a.transpose(0, 2, 1, 3).reshape(b * t, c)

        # attention output projection + residual (fused)
        x = dense_residual(a, lp["w_o"], lp["b_o"], x)

        # fused LN2 + FC + GELU (bf16 output halves the 4C activation traffic)
        h2 = ln_dense(x, lp["ln2_g"], lp["ln2_b"], lp["w_fc"], lp["b_fc"],
                      gelu=True, out_dtype=jnp.bfloat16)

        # MLP projection + residual (fused)
        x = dense_residual(h2, lp["w_proj"], lp["b_proj"], x)

    # fused final LN + LM head
    logits = ln_dense(x, params["lnf_g"], params["lnf_b"],
                      params["w_lm"], params["b_lm"]).reshape(b, t, vocab)

    # build the grown cache: the full past is copied exactly once.
    # TODO(synk): a caller-managed (L,B,H,max_pos,Dh) slab + input_output_aliases
    #             would remove this copy; the ONNXDecoder contract returns the
    #             grown (P+T) cache, so one concatenate per tensor is required.
    new_k = jnp.stack(new_k_list)                                  # (L,B,H,T,Dh)
    new_v = jnp.stack(new_v_list)
    new_attns = jnp.concatenate([attns, new_k], axis=3)            # (L,B,H,P+T,Dh)
    new_values = jnp.concatenate([values, new_v], axis=3)
    return logits, new_attns, new_values


# --------------------------------- driver -----------------------------------

if __name__ == "__main__":
    B, T, P = 2, 8, 8          # batch, new tokens, past length
    L, H, DH = 2, 2, 16        # layers, heads, head dim  (hidden C = 32)
    V, MAX_POS = 128, 64       # vocab, max positions

    key = jax.random.PRNGKey(0)
    kp, ki, ka, kv = jax.random.split(key, 4)

    params = init_params(kp, vocab=V, max_pos=MAX_POS,
                         n_layer=L, n_head=H, head_dim=DH)

    input_ids = jax.random.randint(ki, (B, T), 0, V, dtype=jnp.int32)
    attns = 0.1 * jax.random.normal(ka, (L, B, H, P, DH), jnp.float32)
    values = 0.1 * jax.random.normal(kv, (L, B, H, P, DH), jnp.float32)

    fwd = jax.jit(onnx_decoder_forward)
    logits, new_attns, new_values = fwd(params, input_ids, attns, values)
    jax.block_until_ready((logits, new_attns, new_values))

    assert logits.shape == (B, T, V)
    assert new_attns.shape == (L, B, H, P + T, DH)
    assert new_values.shape == (L, B, H, P + T, DH)
    assert bool(jnp.all(jnp.isfinite(logits)))
    print("KERNEL_OK")
</pallas_src>

<mosaic_0001>
module attributes {stable_mosaic.version = 11 : i64} {
  func.func @_ln_dense_kernel(%arg0: i32, %arg1: i32, %arg2: memref<16x32xf32, #tpu.memory_space<vmem>>, %arg3: memref<1x32xf32, #tpu.memory_space<vmem>>, %arg4: memref<1x32xf32, #tpu.memory_space<vmem>>, %arg5: memref<32x96xbf16, #tpu.memory_space<vmem>>, %arg6: memref<1x96xf32, #tpu.memory_space<vmem>>, %arg7: memref<16x96xf32, #tpu.memory_space<vmem>>, %arg8: memref<16x32xbf16, #tpu.memory_space<vmem>>) attributes {dimension_semantics = [#tpu.dimension_semantics<parallel>, #tpu.dimension_semantics<arbitrary>], iteration_bounds = array<i64: 1, 1>, scalar_prefetch = 0 : i64, scratch_operands = 1 : i64, tpu.core_type = #tpu.core_type<tc>, window_params = [{transform_indices = @transform_0, window_bounds = array<i64: 16, 32>}, {pipeline_mode = #tpu.pipeline_mode<synchronous>, transform_indices = @transform_1, window_bounds = array<i64: 1, 32>}, {pipeline_mode = #tpu.pipeline_mode<synchronous>, transform_indices = @transform_2, window_bounds = array<i64: 1, 32>}, {transform_indices = @transform_3, window_bounds = array<i64: 32, 96>}, {transform_indices = @transform_4, window_bounds = array<i64: 1, 96>}, {transform_indices = @transform_5, window_bounds = array<i64: 16, 96>}]} {
    %c0_i32 = arith.constant 0 : i32
    %0 = arith.cmpi eq, %arg1, %c0_i32 : i32
    %1 = arith.extui %0 : i1 to i32
    %c0_i32_0 = arith.constant 0 : i32
    %2 = arith.cmpi ne, %1, %c0_i32_0 : i32
    scf.if %2 {
      %c0_8 = arith.constant 0 : index
      %c0_9 = arith.constant 0 : index
      %10 = vector.load %arg2[%c0_8, %c0_9] : memref<16x32xf32, #tpu.memory_space<vmem>>, vector<16x32xf32>
      %cst_10 = arith.constant dense<0.000000e+00> : vector<16xf32>
      %11 = vector.multi_reduction <add>, %10, %cst_10 [1] : vector<16x32xf32> to vector<16xf32>
      %12 = vector.shape_cast %11 : vector<16xf32> to vector<16x1xf32>
      %cst_11 = arith.constant 3.200000e+01 : f32
      %13 = vector.broadcast %cst_11 : f32 to vector<16x1xf32>
      %14 = arith.divf %12, %13 : vector<16x1xf32>
      %15 = vector.broadcast %14 : vector<16x1xf32> to vector<16x32xf32>
      %16 = arith.subf %10, %15 : vector<16x32xf32>
      %17 = arith.mulf %16, %16 : vector<16x32xf32>
      %cst_12 = arith.constant dense<0.000000e+00> : vector<16xf32>
      %18 = vector.multi_reduction <add>, %17, %cst_12 [1] : vector<16x32xf32> to vector<16xf32>
      %19 = vector.shape_cast %18 : vector<16xf32> to vector<16x1xf32>
      %cst_13 = arith.constant 3.200000e+01 : f32
      %20 = vector.broadcast %cst_13 : f32 to vector<16x1xf32>
      %21 = arith.divf %19, %20 : vector<16x1xf32>
      %22 = vector.broadcast %14 : vector<16x1xf32> to vector<16x32xf32>
      %23 = arith.subf %10, %22 : vector<16x32xf32>
      %cst_14 = arith.constant 9.99999974E-6 : f32
      %24 = vector.broadcast %cst_14 : f32 to vector<16x1xf32>
      %25 = arith.addf %21, %24 : vector<16x1xf32>
      %26 = math.rsqrt %25 : vector<16x1xf32>
      %27 = vector.broadcast %26 : vector<16x1xf32> to vector<16x32xf32>
      %28 = arith.mulf %23, %27 : vector<16x32xf32>
      %c0_15 = arith.constant 0 : index
      %c0_16 = arith.constant 0 : index
      %29 = vector.load %arg3[%c0_15, %c0_16] : memref<1x32xf32, #tpu.memory_space<vmem>>, vector<1x32xf32>
      %30 = vector.broadcast %29 : vector<1x32xf32> to vector<16x32xf32>
      %31 = arith.mulf %28, %30 : vector<16x32xf32>
      %c0_17 = arith.constant 0 : index
      %c0_18 = arith.constant 0 : index
      %32 = vector.load %arg4[%c0_17, %c0_18] : memref<1x32xf32, #tpu.memory_space<vmem>>, vector<1x32xf32>
      %33 = vector.broadcast %32 : vector<1x32xf32> to vector<16x32xf32>
      %34 = arith.addf %31, %33 : vector<16x32xf32>
      %35 = arith.truncf %34 : vector<16x32xf32> to vector<16x32xbf16>
      %c0_19 = arith.constant 0 : index
      %c0_20 = arith.constant 0 : index
      %36 = vector.load %arg8[%c0_19, %c0_20] : memref<16x32xbf16, #tpu.memory_space<vmem>>, vector<16x32xbf16>
      tpu.vector_store %arg8[%c0_19, %c0_20], %35 {strides = array<i32>} : memref<16x32xbf16, #tpu.memory_space<vmem>>, vector<16x32xbf16>,
    } else {
    }
    %c0 = arith.constant 0 : index
    %c0_1 = arith.constant 0 : index
    %3 = vector.load %arg8[%c0, %c0_1] : memref<16x32xbf16, #tpu.memory_space<vmem>>, vector<16x32xbf16>
    %c0_2 = arith.constant 0 : index
    %c0_3 = arith.constant 0 : index
    %4 = vector.load %arg5[%c0_2, %c0_3] : memref<32x96xbf16, #tpu.memory_space<vmem>>, vector<32x96xbf16>
    %cst = arith.constant dense<0.000000e+00> : vector<16x96xf32>
    %5 = tpu.matmul %3, %4, %cst {dimension_numbers = #tpu.dot_dimension_numbers<[1], [0], [0], [1], [0, 0, 1, 1], [], []>} : vector<16x32xbf16>, vector<32x96xbf16>, vector<16x96xf32> -> vector<16x96xf32>
    %c0_4 = arith.constant 0 : index
    %c0_5 = arith.constant 0 : index
    %6 = vector.load %arg6[%c0_4, %c0_5] : memref<1x96xf32, #tpu.memory_space<vmem>>, vector<1x96xf32>
    %7 = vector.broadcast %6 : vector<1x96xf32> to vector<16x96xf32>
    %8 = arith.addf %5, %7 : vector<16x96xf32>
    %c0_6 = arith.constant 0 : index
    %c0_7 = arith.constant 0 : index
    %9 = vector.load %arg7[%c0_6, %c0_7] : memref<16x96xf32, #tpu.memory_space<vmem>>, vector<16x96xf32>
    tpu.vector_store %arg7[%c0_6, %c0_7], %8 {strides = array<i32>} : memref<16x96xf32, #tpu.memory_space<vmem>>, vector<16x96xf32>,
    return
  }
  func.func @transform_0(%arg0: i32, %arg1: i32) -> (i32, i32) {
    %c0_i32 = arith.constant 0 : i32
    %c0_i32_0 = arith.constant 0 : i32
    return %arg0, %c0_i32 : i32, i32
  }
  func.func @transform_1(%arg0: i32, %arg1: i32) -> (i32, i32) {
    %c0_i32 = arith.constant 0 : i32
    %c0_i32_0 = arith.constant 0 : i32
    %c0_i32_1 = arith.constant 0 : i32
    return %c0_i32, %c0_i32_0 : i32, i32
  }
  func.func @transform_2(%arg0: i32, %arg1: i32) -> (i32, i32) {
    %c0_i32 = arith.constant 0 : i32
    %c0_i32_0 = arith.constant 0 : i32
    %c0_i32_1 = arith.constant 0 : i32
    return %c0_i32, %c0_i32_0 : i32, i32
  }
  func.func @transform_3(%arg0: i32, %arg1: i32) -> (i32, i32) {
    %c0_i32 = arith.constant 0 : i32
    %c0_i32_0 = arith.constant 0 : i32
    return %c0_i32, %arg1 : i32, i32
  }
  func.func @transform_4(%arg0: i32, %arg1: i32) -> (i32, i32) {
    %c0_i32 = arith.constant 0 : i32
    %c0_i32_0 = arith.constant 0 : i32
    return %c0_i32, %arg1 : i32, i32
  }
  func.func @transform_5(%arg0: i32, %arg1: i32) -> (i32, i32) {
    %c0_i32 = arith.constant 0 : i32
    return %arg0, %arg1 : i32, i32
  }
}

module attributes {stable_mosaic.version = 11 : i64} {
  func.func @_attn_kernel(%arg0: i32, %arg1: i32, %arg2: memref<1x1x8x16xf32, #tpu.memory_space<vmem>>, %arg3: memref<1x1x8x16xf32, #tpu.memory_space<vmem>>, %arg4: memref<1x1x8x16xf32, #tpu.memory_space<vmem>>, %arg5: memref<1x1x8x16xf32, #tpu.memory_space<vmem>>, %arg6: memref<1x1x8x16xf32, #tpu.memory_space<vmem>>, %arg7: memref<1x1x8x16xbf16, #tpu.memory_space<vmem>>) attributes {dimension_semantics = [#tpu.dimension_semantics<parallel>, #tpu.dimension_semantics<parallel>], iteration_bounds = array<i64: 2, 2>, scalar_prefetch = 0 : i64, scratch_operands = 0 : i64, tpu.core_type = #tpu.core_type<tc>, window_params = [{transform_indices = @transform_0, window_bounds = array<i64: 1, 1, 8, 16>}, {transform_indices = @transform_1, window_bounds = array<i64: 1, 1, 8, 16>}, {transform_indices = @transform_2, window_bounds = array<i64: 1, 1, 8, 16>}, {transform_indices = @transform_3, window_bounds = array<i64: 1, 1, 8, 16>}, {transform_indices = @transform_4, window_bounds = array<i64: 1, 1, 8, 16>}, {transform_indices = @transform_5, window_bounds = array<i64: 1, 1, 8, 16>}]} {
    %c0 = arith.constant 0 : index
    %c0_0 = arith.constant 0 : index
    %c0_1 = arith.constant 0 : index
    %c0_2 = arith.constant 0 : index
    %0 = vector.load %arg2[%c0, %c0_0, %c0_1, %c0_2] : memref<1x1x8x16xf32, #tpu.memory_space<vmem>>, vector<1x1x8x16xf32>
    %1 = vector.shape_cast %0 : vector<1x1x8x16xf32> to vector<8x16xf32>
    %cst = arith.constant 2.500000e-01 : f32
    %2 = vector.broadcast %cst : f32 to vector<8x16xf32>
    %3 = arith.mulf %1, %2 : vector<8x16xf32>
    %4 = arith.truncf %3 : vector<8x16xf32> to vector<8x16xbf16>
    %c0_3 = arith.constant 0 : index
    %c0_4 = arith.constant 0 : index
    %c0_5 = arith.constant 0 : index
    %c0_6 = arith.constant 0 : index
    %5 = vector.load %arg3[%c0_3, %c0_4, %c0_5, %c0_6] : memref<1x1x8x16xf32, #tpu.memory_space<vmem>>, vector<1x1x8x16xf32>
    %6 = vector.shape_cast %5 : vector<1x1x8x16xf32> to vector<8x16xf32>
    %7 = arith.truncf %6 : vector<8x16xf32> to vector<8x16xbf16>
    %c0_7 = arith.constant 0 : index
    %c0_8 = arith.constant 0 : index
    %c0_9 = arith.constant 0 : index
    %c0_10 = arith.constant 0 : index
    %8 = vector.load %arg4[%c0_7, %c0_8, %c0_9, %c0_10] : memref<1x1x8x16xf32, #tpu.memory_space<vmem>>, vector<1x1x8x16xf32>
    %9 = vector.shape_cast %8 : vector<1x1x8x16xf32> to vector<8x16xf32>
    %10 = arith.truncf %9 : vector<8x16xf32> to vector<8x16xbf16>
    %cst_11 = arith.constant dense<0.000000e+00> : vector<8x8xf32>
    %11 = tpu.matmul %4, %7, %cst_11 {dimension_numbers = #tpu.dot_dimension_numbers<[1], [1], [0], [0], [0, 0, 1, 0], [], []>} : vector<8x16xbf16>, vector<8x16xbf16>, vector<8x8xf32> -> vector<8x8xf32>
    %12 = tpu.iota {dimensions = array<i32: 0>} : vector<8x8xi32>
    %13 = tpu.iota {dimensions = array<i32: 1>} : vector<8x8xi32>
    %14 = arith.cmpi sle, %13, %12 : vector<8x8xi32>
    %cst_12 = arith.constant -1.000000e+30 : f32
    %15 = vector.broadcast %cst_12 : f32 to vector<8x8xf32>
    %16 = arith.select %14, %11, %15 : vector<8x8xi1>, vector<8x8xf32>
    %cst_13 = arith.constant dense<0xFF800000> : vector<8xf32>
    %17 = vector.multi_reduction <maximumf>, %16, %cst_13 [1] : vector<8x8xf32> to vector<8xf32>
    %18 = vector.shape_cast %17 : vector<8xf32> to vector<8x1xf32>
    %c0_14 = arith.constant 0 : index
    %c0_15 = arith.constant 0 : index
    %c0_16 = arith.constant 0 : index
    %c0_17 = arith.constant 0 : index
    %19 = vector.load %arg5[%c0_14, %c0_15, %c0_16, %c0_17] : memref<1x1x8x16xf32, #tpu.memory_space<vmem>>, vector<1x1x8x16xf32>
    %20 = vector.shape_cast %19 : vector<1x1x8x16xf32> to vector<8x16xf32>
    %21 = arith.truncf %20 : vector<8x16xf32> to vector<8x16xbf16>
    %c0_18 = arith.constant 0 : index
    %c0_19 = arith.constant 0 : index
    %c0_20 = arith.constant 0 : index
    %c0_21 = arith.constant 0 : index
    %22 = vector.load %arg6[%c0_18, %c0_19, %c0_20, %c0_21] : memref<1x1x8x16xf32, #tpu.memory_space<vmem>>, vector<1x1x8x16xf32>
    %23 = vector.shape_cast %22 : vector<1x1x8x16xf32> to vector<8x16xf32>
    %24 = arith.truncf %23 : vector<8x16xf32> to vector<8x16xbf16>
    %cst_22 = arith.constant dense<0.000000e+00> : vector<8x8xf32>
    %25 = tpu.matmul %4, %21, %cst_22 {dimension_numbers = #tpu.dot_dimension_numbers<[1], [1], [0], [0], [0, 0, 1, 0], [], []>} : vector<8x16xbf16>, vector<8x16xbf16>, vector<8x8xf32> -> vector<8x8xf32>
    %cst_23 = arith.constant dense<0xFF800000> : vector<8xf32>
    %26 = vector.multi_reduction <maximumf>, %25, %cst_23 [1] : vector<8x8xf32> to vector<8xf32>
    %27 = vector.shape_cast %26 : vector<8xf32> to vector<8x1xf32>
    %28 = arith.maximumf %18, %27 : vector<8x1xf32>
    %29 = vector.broadcast %28 : vector<8x1xf32> to vector<8x8xf32>
    %30 = arith.subf %25, %29 : vector<8x8xf32>
    %31 = math.exp %30 : vector<8x8xf32>
    %32 = vector.broadcast %28 : vector<8x1xf32> to vector<8x8xf32>
    %33 = arith.subf %16, %32 : vector<8x8xf32>
    %34 = math.exp %33 : vector<8x8xf32>
    %cst_24 = arith.constant dense<0.000000e+00> : vector<8xf32>
    %35 = vector.multi_reduction <add>, %31, %cst_24 [1] : vector<8x8xf32> to vector<8xf32>
    %36 = vector.shape_cast %35 : vector<8xf32> to vector<8x1xf32>
    %cst_25 = arith.constant dense<0.000000e+00> : vector<8xf32>
    %37 = vector.multi_reduction <add>, %34, %cst_25 [1] : vector<8x8xf32> to vector<8xf32>
    %38 = vector.shape_cast %37 : vector<8xf32> to vector<8x1xf32>
    %39 = arith.addf %36, %38 : vector<8x1xf32>
    %40 = arith.truncf %31 : vector<8x8xf32> to vector<8x8xbf16>
    %cst_26 = arith.constant dense<0.000000e+00> : vector<8x16xf32>
    %41 = tpu.matmul %40, %24, %cst_26 {dimension_numbers = #tpu.dot_dimension_numbers<[1], [0], [0], [1], [0, 0, 1, 1], [], []>} : vector<8x8xbf16>, vector<8x16xbf16>, vector<8x16xf32> -> vector<8x16xf32>
    %42 = arith.truncf %34 : vector<8x8xf32> to vector<8x8xbf16>
    %cst_27 = arith.constant dense<0.000000e+00> : vector<8x16xf32>
    %43 = tpu.matmul %42, %10, %cst_27 {dimension_numbers = #tpu.dot_dimension_numbers<[1], [0], [0], [1], [0, 0, 1, 1], [], []>} : vector<8x8xbf16>, vector<8x16xbf16>, vector<8x16xf32> -> vector<8x16xf32>
    %44 = arith.addf %41, %43 : vector<8x16xf32>
    %45 = vector.broadcast %39 : vector<8x1xf32> to vector<8x16xf32>
    %46 = arith.divf %44, %45 : vector<8x16xf32>
    %47 = arith.truncf %46 : vector<8x16xf32> to vector<8x16xbf16>
    %c0_28 = arith.constant 0 : index
    %c0_29 = arith.constant 0 : index
    %c0_30 = arith.constant 0 : index
    %c0_31 = arith.constant 0 : index
    %48 = vector.load %arg7[%c0_28, %c0_29, %c0_30, %c0_31] : memref<1x1x8x16xbf16, #tpu.memory_space<vmem>>, vector<1x1x8x16xbf16>
    %49 = vector.shape_cast %48 : vector<1x1x8x16xbf16> to vector<8x16xbf16>
    %50 = vector.shape_cast %47 : vector<8x16xbf16> to vector<1x1x8x16xbf16>
    tpu.vector_store %arg7[%c0_28, %c0_29, %c0_30, %c0_31], %50 {strides = array<i32>} : memref<1x1x8x16xbf16, #tpu.memory_space<vmem>>, vector<1x1x8x16xbf16>,
    return
  }
  func.func @transform_0(%arg0: i32, %arg1: i32) -> (i32, i32, i32, i32) {
    %c0_i32 = arith.constant 0 : i32
    %c0_i32_0 = arith.constant 0 : i32
    %c0_i32_1 = arith.constant 0 : i32
    return %arg0, %arg1, %c0_i32, %c0_i32_0 : i32, i32, i32, i32
  }
  func.func @transform_1(%arg0: i32, %arg1: i32) -> (i32, i32, i32, i32) {
    %c0_i32 = arith.constant 0 : i32
    %c0_i32_0 = arith.constant 0 : i32
    %c0_i32_1 = arith.constant 0 : i32
    return %arg0, %arg1, %c0_i32, %c0_i32_0 : i32, i32, i32, i32
  }
  func.func @transform_2(%arg0: i32, %arg1: i32) -> (i32, i32, i32, i32) {
    %c0_i32 = arith.constant 0 : i32
    %c0_i32_0 = arith.constant 0 : i32
    %c0_i32_1 = arith.constant 0 : i32
    return %arg0, %arg1, %c0_i32, %c0_i32_0 : i32, i32, i32, i32
  }
  func.func @transform_3(%arg0: i32, %arg1: i32) -> (i32, i32, i32, i32) {
    %c0_i32 = arith.constant 0 : i32
    %c0_i32_0 = arith.constant 0 : i32
    %c0_i32_1 = arith.constant 0 : i32
    return %arg0, %arg1, %c0_i32, %c0_i32_0 : i32, i32, i32, i32
  }
  func.func @transform_4(%arg0: i32, %arg1: i32) -> (i32, i32, i32, i32) {
    %c0_i32 = arith.constant 0 : i32
    %c0_i32_0 = arith.constant 0 : i32
    %c0_i32_1 = arith.constant 0 : i32
    return %arg0, %arg1, %c0_i32, %c0_i32_0 : i32, i32, i32, i32
  }
  func.func @transform_5(%arg0: i32, %arg1: i32) -> (i32, i32, i32, i32) {
    %c0_i32 = arith.constant 0 : i32
    %c0_i32_0 = arith.constant 0 : i32
    %c0_i32_1 = arith.constant 0 : i32
    return %arg0, %arg1, %c0_i32, %c0_i32_0 : i32, i32, i32, i32
  }
}

module attributes {stable_mosaic.version = 11 : i64} {
  func.func @_dense_residual_kernel(%arg0: i32, %arg1: i32, %arg2: i32, %arg3: memref<16x32xbf16, #tpu.memory_space<vmem>>, %arg4: memref<32x32xbf16, #tpu.memory_space<vmem>>, %arg5: memref<1x32xf32, #tpu.memory_space<vmem>>, %arg6: memref<16x32xf32, #tpu.memory_space<vmem>>, %arg7: memref<16x32xf32, #tpu.memory_space<vmem>>) attributes {dimension_semantics = [#tpu.dimension_semantics<parallel>, #tpu.dimension_semantics<parallel>, #tpu.dimension_semantics<arbitrary>], iteration_bounds = array<i64: 1, 1, 1>, scalar_prefetch = 0 : i64, scratch_operands = 0 : i64, tpu.core_type = #tpu.core_type<tc>, window_params = [{transform_indices = @transform_0, window_bounds = array<i64: 16, 32>}, {transform_indices = @transform_1, window_bounds = array<i64: 32, 32>}, {transform_indices = @transform_2, window_bounds = array<i64: 1, 32>}, {transform_indices = @transform_3, window_bounds = array<i64: 16, 32>}, {transform_indices = @transform_4, window_bounds = array<i64: 16, 32>}]} {
    %c0_i32 = arith.constant 0 : i32
    %0 = arith.cmpi eq, %arg2, %c0_i32 : i32
    %1 = arith.extui %0 : i1 to i32
    %c0_i32_0 = arith.constant 0 : i32
    %2 = arith.cmpi ne, %1, %c0_i32_0 : i32
    scf.if %2 {
      %cst_10 = arith.constant 0.000000e+00 : f32
      %12 = vector.broadcast %cst_10 : f32 to vector<16x32xf32>
      %c0_11 = arith.constant 0 : index
      %c0_12 = arith.constant 0 : index
      %13 = vector.load %arg7[%c0_11, %c0_12] : memref<16x32xf32, #tpu.memory_space<vmem>>, vector<16x32xf32>
      tpu.vector_store %arg7[%c0_11, %c0_12], %12 {strides = array<i32>} : memref<16x32xf32, #tpu.memory_space<vmem>>, vector<16x32xf32>,
    } else {
    }
    %c0 = arith.constant 0 : index
    %c0_1 = arith.constant 0 : index
    %3 = vector.load %arg7[%c0, %c0_1] : memref<16x32xf32, #tpu.memory_space<vmem>>, vector<16x32xf32>
    %c0_2 = arith.constant 0 : index
    %c0_3 = arith.constant 0 : index
    %4 = vector.load %arg3[%c0_2, %c0_3] : memref<16x32xbf16, #tpu.memory_space<vmem>>, vector<16x32xbf16>
    %c0_4 = arith.constant 0 : index
    %c0_5 = arith.constant 0 : index
    %5 = vector.load %arg4[%c0_4, %c0_5] : memref<32x32xbf16, #tpu.memory_space<vmem>>, vector<32x32xbf16>
    %cst = arith.constant dense<0.000000e+00> : vector<16x32xf32>
    %6 = tpu.matmul %4, %5, %cst {dimension_numbers = #tpu.dot_dimension_numbers<[1], [0], [0], [1], [0, 0, 1, 1], [], []>} : vector<16x32xbf16>, vector<32x32xbf16>, vector<16x32xf32> -> vector<16x32xf32>
    %7 = arith.addf %3, %6 : vector<16x32xf32>
    %c0_6 = arith.constant 0 : index
    %c0_7 = arith.constant 0 : index
    %8 = vector.load %arg7[%c0_6, %c0_7] : memref<16x32xf32, #tpu.memory_space<vmem>>, vector<16x32xf32>
    tpu.vector_store %arg7[%c0_6, %c0_7], %7 {strides = array<i32>} : memref<16x32xf32, #tpu.memory_space<vmem>>, vector<16x32xf32>,
    %c0_i32_8 = arith.constant 0 : i32
    %9 = arith.cmpi eq, %arg2, %c0_i32_8 : i32
    %10 = arith.extui %9 : i1 to i32
    %c0_i32_9 = arith.constant 0 : i32
    %11 = arith.cmpi ne, %10, %c0_i32_9 : i32
    scf.if %11 {
      %c0_10 = arith.constant 0 : index
      %c0_11 = arith.constant 0 : index
      %12 = vector.load %arg7[%c0_10, %c0_11] : memref<16x32xf32, #tpu.memory_space<vmem>>, vector<16x32xf32>
      %c0_12 = arith.constant 0 : index
      %c0_13 = arith.constant 0 : index
      %13 = vector.load %arg5[%c0_12, %c0_13] : memref<1x32xf32, #tpu.memory_space<vmem>>, vector<1x32xf32>
      %c0_14 = arith.constant 0 : index
      %c0_15 = arith.constant 0 : index
      %14 = vector.load %arg6[%c0_14, %c0_15] : memref<16x32xf32, #tpu.memory_space<vmem>>, vector<16x32xf32>
      %15 = vector.broadcast %13 : vector<1x32xf32> to vector<16x32xf32>
      %16 = arith.addf %15, %14 : vector<16x32xf32>
      %17 = arith.addf %12, %16 : vector<16x32xf32>
      %c0_16 = arith.constant 0 : index
      %c0_17 = arith.constant 0 : index
      %18 = vector.load %arg7[%c0_16, %c0_17] : memref<16x32xf32, #tpu.memory_space<vmem>>, vector<16x32xf32>
      tpu.vector_store %arg7[%c0_16, %c0_17], %17 {strides = array<i32>} : memref<16x32xf32, #tpu.memory_space<vmem>>, vector<16x32xf32>,
    } else {
    }
    return
  }
  func.func @transform_0(%arg0: i32, %arg1: i32, %arg2: i32) -> (i32, i32) {
    %c0_i32 = arith.constant 0 : i32
    return %arg0, %arg2 : i32, i32
  }
  func.func @transform_1(%arg0: i32, %arg1: i32, %arg2: i32) -> (i32, i32) {
    %c0_i32 = arith.constant 0 : i32
    return %arg2, %arg1 : i32, i32
  }
  func.func @transform_2(%arg0: i32, %arg1: i32, %arg2: i32) -> (i32, i32) {
    %c0_i32 = arith.constant 0 : i32
    %c0_i32_0 = arith.constant 0 : i32
    return %c0_i32, %arg1 : i32, i32
  }
  func.func @transform_3(%arg0: i32, %arg1: i32, %arg2: i32) -> (i32, i32) {
    %c0_i32 = arith.constant 0 : i32
    return %arg0, %arg1 : i32, i32
  }
  func.func @transform_4(%arg0: i32, %arg1: i32, %arg2: i32) -> (i32, i32) {
    %c0_i32 = arith.constant 0 : i32
    return %arg0, %arg1 : i32, i32
  }
}

module attributes {stable_mosaic.version = 11 : i64} {
  func.func @_ln_dense_kernel(%arg0: i32, %arg1: i32, %arg2: memref<16x32xf32, #tpu.memory_space<vmem>>, %arg3: memref<1x32xf32, #tpu.memory_space<vmem>>, %arg4: memref<1x32xf32, #tpu.memory_space<vmem>>, %arg5: memref<32x128xbf16, #tpu.memory_space<vmem>>, %arg6: memref<1x128xf32, #tpu.memory_space<vmem>>, %arg7: memref<16x128xbf16, #tpu.memory_space<vmem>>, %arg8: memref<16x32xbf16, #tpu.memory_space<vmem>>) attributes {dimension_semantics = [#tpu.dimension_semantics<parallel>, #tpu.dimension_semantics<arbitrary>], iteration_bounds = array<i64: 1, 1>, scalar_prefetch = 0 : i64, scratch_operands = 1 : i64, tpu.core_type = #tpu.core_type<tc>, window_params = [{transform_indices = @transform_0, window_bounds = array<i64: 16, 32>}, {pipeline_mode = #tpu.pipeline_mode<synchronous>, transform_indices = @transform_1, window_bounds = array<i64: 1, 32>}, {pipeline_mode = #tpu.pipeline_mode<synchronous>, transform_indices = @transform_2, window_bounds = array<i64: 1, 32>}, {transform_indices = @transform_3, window_bounds = array<i64: 32, 128>}, {transform_indices = @transform_4, window_bounds = array<i64: 1, 128>}, {transform_indices = @transform_5, window_bounds = array<i64: 16, 128>}]} {
    %c0_i32 = arith.constant 0 : i32
    %0 = arith.cmpi eq, %arg1, %c0_i32 : i32
    %1 = arith.extui %0 : i1 to i32
    %c0_i32_0 = arith.constant 0 : i32
    %2 = arith.cmpi ne, %1, %c0_i32_0 : i32
    scf.if %2 {
      %c0_12 = arith.constant 0 : index
      %c0_13 = arith.constant 0 : index
      %24 = vector.load %arg2[%c0_12, %c0_13] : memref<16x32xf32, #tpu.memory_space<vmem>>, vector<16x32xf32>
      %cst_14 = arith.constant dense<0.000000e+00> : vector<16xf32>
      %25 = vector.multi_reduction <add>, %24, %cst_14 [1] : vector<16x32xf32> to vector<16xf32>
      %26 = vector.shape_cast %25 : vector<16xf32> to vector<16x1xf32>
      %cst_15 = arith.constant 3.200000e+01 : f32
      %27 = vector.broadcast %cst_15 : f32 to vector<16x1xf32>
      %28 = arith.divf %26, %27 : vector<16x1xf32>
      %29 = vector.broadcast %28 : vector<16x1xf32> to vector<16x32xf32>
      %30 = arith.subf %24, %29 : vector<16x32xf32>
      %31 = arith.mulf %30, %30 : vector<16x32xf32>
      %cst_16 = arith.constant dense<0.000000e+00> : vector<16xf32>
      %32 = vector.multi_reduction <add>, %31, %cst_16 [1] : vector<16x32xf32> to vector<16xf32>
      %33 = vector.shape_cast %32 : vector<16xf32> to vector<16x1xf32>
      %cst_17 = arith.constant 3.200000e+01 : f32
      %34 = vector.broadcast %cst_17 : f32 to vector<16x1xf32>
      %35 = arith.divf %33, %34 : vector<16x1xf32>
      %36 = vector.broadcast %28 : vector<16x1xf32> to vector<16x32xf32>
      %37 = arith.subf %24, %36 : vector<16x32xf32>
      %cst_18 = arith.constant 9.99999974E-6 : f32
      %38 = vector.broadcast %cst_18 : f32 to vector<16x1xf32>
      %39 = arith.addf %35, %38 : vector<16x1xf32>
      %40 = math.rsqrt %39 : vector<16x1xf32>
      %41 = vector.broadcast %40 : vector<16x1xf32> to vector<16x32xf32>
      %42 = arith.mulf %37, %41 : vector<16x32xf32>
      %c0_19 = arith.constant 0 : index
      %c0_20 = arith.constant 0 : index
      %43 = vector.load %arg3[%c0_19, %c0_20] : memref<1x32xf32, #tpu.memory_space<vmem>>, vector<1x32xf32>
      %44 = vector.broadcast %43 : vector<1x32xf32> to vector<16x32xf32>
      %45 = arith.mulf %42, %44 : vector<16x32xf32>
      %c0_21 = arith.constant 0 : index
      %c0_22 = arith.constant 0 : index
      %46 = vector.load %arg4[%c0_21, %c0_22] : memref<1x32xf32, #tpu.memory_space<vmem>>, vector<1x32xf32>
      %47 = vector.broadcast %46 : vector<1x32xf32> to vector<16x32xf32>
      %48 = arith.addf %45, %47 : vector<16x32xf32>
      %49 = arith.truncf %48 : vector<16x32xf32> to vector<16x32xbf16>
      %c0_23 = arith.constant 0 : index
      %c0_24 = arith.constant 0 : index
      %50 = vector.load %arg8[%c0_23, %c0_24] : memref<16x32xbf16, #tpu.memory_space<vmem>>, vector<16x32xbf16>
      tpu.vector_store %arg8[%c0_23, %c0_24], %49 {strides = array<i32>} : memref<16x32xbf16, #tpu.memory_space<vmem>>, vector<16x32xbf16>,
    } else {
    }
    %c0 = arith.constant 0 : index
    %c0_1 = arith.constant 0 : index
    %3 = vector.load %arg8[%c0, %c0_1] : memref<16x32xbf16, #tpu.memory_space<vmem>>, vector<16x32xbf16>
    %c0_2 = arith.constant 0 : index
    %c0_3 = arith.constant 0 : index
    %4 = vector.load %arg5[%c0_2, %c0_3] : memref<32x128xbf16, #tpu.memory_space<vmem>>, vector<32x128xbf16>
    %cst = arith.constant dense<0.000000e+00> : vector<16x128xf32>
    %5 = tpu.matmul %3, %4, %cst {dimension_numbers = #tpu.dot_dimension_numbers<[1], [0], [0], [1], [0, 0, 1, 1], [], []>} : vector<16x32xbf16>, vector<32x128xbf16>, vector<16x128xf32> -> vector<16x128xf32>
    %c0_4 = arith.constant 0 : index
    %c0_5 = arith.constant 0 : index
    %6 = vector.load %arg6[%c0_4, %c0_5] : memref<1x128xf32, #tpu.memory_space<vmem>>, vector<1x128xf32>
    %7 = vector.broadcast %6 : vector<1x128xf32> to vector<16x128xf32>
    %8 = arith.addf %5, %7 : vector<16x128xf32>
    %9 = arith.mulf %8, %8 : vector<16x128xf32>
    %10 = arith.mulf %8, %9 : vector<16x128xf32>
    %cst_6 = arith.constant 4.471500e-02 : f32
    %11 = vector.broadcast %cst_6 : f32 to vector<16x128xf32>
    %12 = arith.mulf %11, %10 : vector<16x128xf32>
    %13 = arith.addf %8, %12 : vector<16x128xf32>
    %cst_7 = arith.constant 0.797884583 : f32
    %14 = vector.broadcast %cst_7 : f32 to vector<16x128xf32>
    %15 = arith.mulf %14, %13 : vector<16x128xf32>
    %16 = math.tanh %15 : vector<16x128xf32>
    %cst_8 = arith.constant 1.000000e+00 : f32
    %17 = vector.broadcast %cst_8 : f32 to vector<16x128xf32>
    %18 = arith.addf %17, %16 : vector<16x128xf32>
    %cst_9 = arith.constant 5.000000e-01 : f32
    %19 = vector.broadcast %cst_9 : f32 to vector<16x128xf32>
    %20 = arith.mulf %19, %18 : vector<16x128xf32>
    %21 = arith.mulf %8, %20 : vector<16x128xf32>
    %22 = arith.truncf %21 : vector<16x128xf32> to vector<16x128xbf16>
    %c0_10 = arith.constant 0 : index
    %c0_11 = arith.constant 0 : index
    %23 = vector.load %arg7[%c0_10, %c0_11] : memref<16x128xbf16, #tpu.memory_space<vmem>>, vector<16x128xbf16>
    tpu.vector_store %arg7[%c0_10, %c0_11], %22 {strides = array<i32>} : memref<16x128xbf16, #tpu.memory_space<vmem>>, vector<16x128xbf16>,
    return
  }
  func.func @transform_0(%arg0: i32, %arg1: i32) -> (i32, i32) {
    %c0_i32 = arith.constant 0 : i32
    %c0_i32_0 = arith.constant 0 : i32
    return %arg0, %c0_i32 : i32, i32
  }
  func.func @transform_1(%arg0: i32, %arg1: i32) -> (i32, i32) {
    %c0_i32 = arith.constant 0 : i32
    %c0_i32_0 = arith.constant 0 : i32
    %c0_i32_1 = arith.constant 0 : i32
    return %c0_i32, %c0_i32_0 : i32, i32
  }
  func.func @transform_2(%arg0: i32, %arg1: i32) -> (i32, i32) {
    %c0_i32 = arith.constant 0 : i32
    %c0_i32_0 = arith.constant 0 : i32
    %c0_i32_1 = arith.constant 0 : i32
    return %c0_i32, %c0_i32_0 : i32, i32
  }
  func.func @transform_3(%arg0: i32, %arg1: i32) -> (i32, i32) {
    %c0_i32 = arith.constant 0 : i32
    %c0_i32_0 = arith.constant 0 : i32
    return %c0_i32, %arg1 : i32, i32
  }
  func.func @transform_4(%arg0: i32, %arg1: i32) -> (i32, i32) {
    %c0_i32 = arith.constant 0 : i32
    %c0_i32_0 = arith.constant 0 : i32
    return %c0_i32, %arg1 : i32, i32
  }
  func.func @transform_5(%arg0: i32, %arg1: i32) -> (i32, i32) {
    %c0_i32 = arith.constant 0 : i32
    return %arg0, %arg1 : i32, i32
  }
}

module attributes {stable_mosaic.version = 11 : i64} {
  func.func @_dense_residual_kernel(%arg0: i32, %arg1: i32, %arg2: i32, %arg3: memref<16x128xbf16, #tpu.memory_space<vmem>>, %arg4: memref<128x32xbf16, #tpu.memory_space<vmem>>, %arg5: memref<1x32xf32, #tpu.memory_space<vmem>>, %arg6: memref<16x32xf32, #tpu.memory_space<vmem>>, %arg7: memref<16x32xf32, #tpu.memory_space<vmem>>) attributes {dimension_semantics = [#tpu.dimension_semantics<parallel>, #tpu.dimension_semantics<parallel>, #tpu.dimension_semantics<arbitrary>], iteration_bounds = array<i64: 1, 1, 1>, scalar_prefetch = 0 : i64, scratch_operands = 0 : i64, tpu.core_type = #tpu.core_type<tc>, window_params = [{transform_indices = @transform_0, window_bounds = array<i64: 16, 128>}, {transform_indices = @transform_1, window_bounds = array<i64: 128, 32>}, {transform_indices = @transform_2, window_bounds = array<i64: 1, 32>}, {transform_indices = @transform_3, window_bounds = array<i64: 16, 32>}, {transform_indices = @transform_4, window_bounds = array<i64: 16, 32>}]} {
    %c0_i32 = arith.constant 0 : i32
    %0 = arith.cmpi eq, %arg2, %c0_i32 : i32
    %1 = arith.extui %0 : i1 to i32
    %c0_i32_0 = arith.constant 0 : i32
    %2 = arith.cmpi ne, %1, %c0_i32_0 : i32
    scf.if %2 {
      %cst_10 = arith.constant 0.000000e+00 : f32
      %12 = vector.broadcast %cst_10 : f32 to vector<16x32xf32>
      %c0_11 = arith.constant 0 : index
      %c0_12 = arith.constant 0 : index
      %13 = vector.load %arg7[%c0_11, %c0_12] : memref<16x32xf32, #tpu.memory_space<vmem>>, vector<16x32xf32>
      tpu.vector_store %arg7[%c0_11, %c0_12], %12 {strides = array<i32>} : memref<16x32xf32, #tpu.memory_space<vmem>>, vector<16x32xf32>,
    } else {
    }
    %c0 = arith.constant 0 : index
    %c0_1 = arith.constant 0 : index
    %3 = vector.load %arg7[%c0, %c0_1] : memref<16x32xf32, #tpu.memory_space<vmem>>, vector<16x32xf32>
    %c0_2 = arith.constant 0 : index
    %c0_3 = arith.constant 0 : index
    %4 = vector.load %arg3[%c0_2, %c0_3] : memref<16x128xbf16, #tpu.memory_space<vmem>>, vector<16x128xbf16>
    %c0_4 = arith.constant 0 : index
    %c0_5 = arith.constant 0 : index
    %5 = vector.load %arg4[%c0_4, %c0_5] : memref<128x32xbf16, #tpu.memory_space<vmem>>, vector<128x32xbf16>
    %cst = arith.constant dense<0.000000e+00> : vector<16x32xf32>
    %6 = tpu.matmul %4, %5, %cst {dimension_numbers = #tpu.dot_dimension_numbers<[1], [0], [0], [1], [0, 0, 1, 1], [], []>} : vector<16x128xbf16>, vector<128x32xbf16>, vector<16x32xf32> -> vector<16x32xf32>
    %7 = arith.addf %3, %6 : vector<16x32xf32>
    %c0_6 = arith.constant 0 : index
    %c0_7 = arith.constant 0 : index
    %8 = vector.load %arg7[%c0_6, %c0_7] : memref<16x32xf32, #tpu.memory_space<vmem>>, vector<16x32xf32>
    tpu.vector_store %arg7[%c0_6, %c0_7], %7 {strides = array<i32>} : memref<16x32xf32, #tpu.memory_space<vmem>>, vector<16x32xf32>,
    %c0_i32_8 = arith.constant 0 : i32
    %9 = arith.cmpi eq, %arg2, %c0_i32_8 : i32
    %10 = arith.extui %9 : i1 to i32
    %c0_i32_9 = arith.constant 0 : i32
    %11 = arith.cmpi ne, %10, %c0_i32_9 : i32
    scf.if %11 {
      %c0_10 = arith.constant 0 : index
      %c0_11 = arith.constant 0 : index
      %12 = vector.load %arg7[%c0_10, %c0_11] : memref<16x32xf32, #tpu.memory_space<vmem>>, vector<16x32xf32>
      %c0_12 = arith.constant 0 : index
      %c0_13 = arith.constant 0 : index
      %13 = vector.load %arg5[%c0_12, %c0_13] : memref<1x32xf32, #tpu.memory_space<vmem>>, vector<1x32xf32>
      %c0_14 = arith.constant 0 : index
      %c0_15 = arith.constant 0 : index
      %14 = vector.load %arg6[%c0_14, %c0_15] : memref<16x32xf32, #tpu.memory_space<vmem>>, vector<16x32xf32>
      %15 = vector.broadcast %13 : vector<1x32xf32> to vector<16x32xf32>
      %16 = arith.addf %15, %14 : vector<16x32xf32>
      %17 = arith.addf %12, %16 : vector<16x32xf32>
      %c0_16 = arith.constant 0 : index
      %c0_17 = arith.constant 0 : index
      %18 = vector.load %arg7[%c0_16, %c0_17] : memref<16x32xf32, #tpu.memory_space<vmem>>, vector<16x32xf32>
      tpu.vector_store %arg7[%c0_16, %c0_17], %17 {strides = array<i32>} : memref<16x32xf32, #tpu.memory_space<vmem>>, vector<16x32xf32>,
    } else {
    }
    return
  }
  func.func @transform_0(%arg0: i32, %arg1: i32, %arg2: i32) -> (i32, i32) {
    %c0_i32 = arith.constant 0 : i32
    return %arg0, %arg2 : i32, i32
  }
  func.func @transform_1(%arg0: i32, %arg1: i32, %arg2: i32) -> (i32, i32) {
    %c0_i32 = arith.constant 0 : i32
    return %arg2, %arg1 : i32, i32
  }
  func.func @transform_2(%arg0: i32, %arg1: i32, %arg2: i32) -> (i32, i32) {
    %c0_i32 = arith.constant 0 : i32
    %c0_i32_0 = arith.constant 0 : i32
    return %c0_i32, %arg1 : i32, i32
  }
  func.func @transform_3(%arg0: i32, %arg1: i32, %arg2: i32) -> (i32, i32) {
    %c0_i32 = arith.constant 0 : i32
    return %arg0, %arg1 : i32, i32
  }
  func.func @transform_4(%arg0: i32, %arg1: i32, %arg2: i32) -> (i32, i32) {
    %c0_i32 = arith.constant 0 : i32
    return %arg0, %arg1 : i32, i32
  }
}

module attributes {stable_mosaic.version = 11 : i64} {
  func.func @_ln_dense_kernel(%arg0: i32, %arg1: i32, %arg2: memref<16x32xf32, #tpu.memory_space<vmem>>, %arg3: memref<1x32xf32, #tpu.memory_space<vmem>>, %arg4: memref<1x32xf32, #tpu.memory_space<vmem>>, %arg5: memref<32x128xbf16, #tpu.memory_space<vmem>>, %arg6: memref<1x128xf32, #tpu.memory_space<vmem>>, %arg7: memref<16x128xf32, #tpu.memory_space<vmem>>, %arg8: memref<16x32xbf16, #tpu.memory_space<vmem>>) attributes {dimension_semantics = [#tpu.dimension_semantics<parallel>, #tpu.dimension_semantics<arbitrary>], iteration_bounds = array<i64: 1, 1>, scalar_prefetch = 0 : i64, scratch_operands = 1 : i64, tpu.core_type = #tpu.core_type<tc>, window_params = [{transform_indices = @transform_0, window_bounds = array<i64: 16, 32>}, {pipeline_mode = #tpu.pipeline_mode<synchronous>, transform_indices = @transform_1, window_bounds = array<i64: 1, 32>}, {pipeline_mode = #tpu.pipeline_mode<synchronous>, transform_indices = @transform_2, window_bounds = array<i64: 1, 32>}, {transform_indices = @transform_3, window_bounds = array<i64: 32, 128>}, {transform_indices = @transform_4, window_bounds = array<i64: 1, 128>}, {transform_indices = @transform_5, window_bounds = array<i64: 16, 128>}]} {
    %c0_i32 = arith.constant 0 : i32
    %0 = arith.cmpi eq, %arg1, %c0_i32 : i32
    %1 = arith.extui %0 : i1 to i32
    %c0_i32_0 = arith.constant 0 : i32
    %2 = arith.cmpi ne, %1, %c0_i32_0 : i32
    scf.if %2 {
      %c0_8 = arith.constant 0 : index
      %c0_9 = arith.constant 0 : index
      %10 = vector.load %arg2[%c0_8, %c0_9] : memref<16x32xf32, #tpu.memory_space<vmem>>, vector<16x32xf32>
      %cst_10 = arith.constant dense<0.000000e+00> : vector<16xf32>
      %11 = vector.multi_reduction <add>, %10, %cst_10 [1] : vector<16x32xf32> to vector<16xf32>
      %12 = vector.shape_cast %11 : vector<16xf32> to vector<16x1xf32>
      %cst_11 = arith.constant 3.200000e+01 : f32
      %13 = vector.broadcast %cst_11 : f32 to vector<16x1xf32>
      %14 = arith.divf %12, %13 : vector<16x1xf32>
      %15 = vector.broadcast %14 : vector<16x1xf32> to vector<16x32xf32>
      %16 = arith.subf %10, %15 : vector<16x32xf32>
      %17 = arith.mulf %16, %16 : vector<16x32xf32>
      %cst_12 = arith.constant dense<0.000000e+00> : vector<16xf32>
      %18 = vector.multi_reduction <add>, %17, %cst_12 [1] : vector<16x32xf32> to vector<16xf32>
      %19 = vector.shape_cast %18 : vector<16xf32> to vector<16x1xf32>
      %cst_13 = arith.constant 3.200000e+01 : f32
      %20 = vector.broadcast %cst_13 : f32 to vector<16x1xf32>
      %21 = arith.divf %19, %20 : vector<16x1xf32>
      %22 = vector.broadcast %14 : vector<16x1xf32> to vector<16x32xf32>
      %23 = arith.subf %10, %22 : vector<16x32xf32>
      %cst_14 = arith.constant 9.99999974E-6 : f32
      %24 = vector.broadcast %cst_14 : f32 to vector<16x1xf32>
      %25 = arith.addf %21, %24 : vector<16x1xf32>
      %26 = math.rsqrt %25 : vector<16x1xf32>
      %27 = vector.broadcast %26 : vector<16x1xf32> to vector<16x32xf32>
      %28 = arith.mulf %23, %27 : vector<16x32xf32>
      %c0_15 = arith.constant 0 : index
      %c0_16 = arith.constant 0 : index
      %29 = vector.load %arg3[%c0_15, %c0_16] : memref<1x32xf32, #tpu.memory_space<vmem>>, vector<1x32xf32>
      %30 = vector.broadcast %29 : vector<1x32xf32> to vector<16x32xf32>
      %31 = arith.mulf %28, %30 : vector<16x32xf32>
      %c0_17 = arith.constant 0 : index
      %c0_18 = arith.constant 0 : index
      %32 = vector.load %arg4[%c0_17, %c0_18] : memref<1x32xf32, #tpu.memory_space<vmem>>, vector<1x32xf32>
      %33 = vector.broadcast %32 : vector<1x32xf32> to vector<16x32xf32>
      %34 = arith.addf %31, %33 : vector<16x32xf32>
      %35 = arith.truncf %34 : vector<16x32xf32> to vector<16x32xbf16>
      %c0_19 = arith.constant 0 : index
      %c0_20 = arith.constant 0 : index
      %36 = vector.load %arg8[%c0_19, %c0_20] : memref<16x32xbf16, #tpu.memory_space<vmem>>, vector<16x32xbf16>
      tpu.vector_store %arg8[%c0_19, %c0_20], %35 {strides = array<i32>} : memref<16x32xbf16, #tpu.memory_space<vmem>>, vector<16x32xbf16>,
    } else {
    }
    %c0 = arith.constant 0 : index
    %c0_1 = arith.constant 0 : index
    %3 = vector.load %arg8[%c0, %c0_1] : memref<16x32xbf16, #tpu.memory_space<vmem>>, vector<16x32xbf16>
    %c0_2 = arith.constant 0 : index
    %c0_3 = arith.constant 0 : index
    %4 = vector.load %arg5[%c0_2, %c0_3] : memref<32x128xbf16, #tpu.memory_space<vmem>>, vector<32x128xbf16>
    %cst = arith.constant dense<0.000000e+00> : vector<16x128xf32>
    %5 = tpu.matmul %3, %4, %cst {dimension_numbers = #tpu.dot_dimension_numbers<[1], [0], [0], [1], [0, 0, 1, 1], [], []>} : vector<16x32xbf16>, vector<32x128xbf16>, vector<16x128xf32> -> vector<16x128xf32>
    %c0_4 = arith.constant 0 : index
    %c0_5 = arith.constant 0 : index
    %6 = vector.load %arg6[%c0_4, %c0_5] : memref<1x128xf32, #tpu.memory_space<vmem>>, vector<1x128xf32>
    %7 = vector.broadcast %6 : vector<1x128xf32> to vector<16x128xf32>
    %8 = arith.addf %5, %7 : vector<16x128xf32>
    %c0_6 = arith.constant 0 : index
    %c0_7 = arith.constant 0 : index
    %9 = vector.load %arg7[%c0_6, %c0_7] : memref<16x128xf32, #tpu.memory_space<vmem>>, vector<16x128xf32>
    tpu.vector_store %arg7[%c0_6, %c0_7], %8 {strides = array<i32>} : memref<16x128xf32, #tpu.memory_space<vmem>>, vector<16x128xf32>,
    return
  }
  func.func @transform_0(%arg0: i32, %arg1: i32) -> (i32, i32) {
    %c0_i32 = arith.constant 0 : i32
    %c0_i32_0 = arith.constant 0 : i32
    return %arg0, %c0_i32 : i32, i32
  }
  func.func @transform_1(%arg0: i32, %arg1: i32) -> (i32, i32) {
    %c0_i32 = arith.constant 0 : i32
    %c0_i32_0 = arith.constant 0 : i32
    %c0_i32_1 = arith.constant 0 : i32
    return %c0_i32, %c0_i32_0 : i32, i32
  }
  func.func @transform_2(%arg0: i32, %arg1: i32) -> (i32, i32) {
    %c0_i32 = arith.constant 0 : i32
    %c0_i32_0 = arith.constant 0 : i32
    %c0_i32_1 = arith.constant 0 : i32
    return %c0_i32, %c0_i32_0 : i32, i32
  }
  func.func @transform_3(%arg0: i32, %arg1: i32) -> (i32, i32) {
    %c0_i32 = arith.constant 0 : i32
    %c0_i32_0 = arith.constant 0 : i32
    return %c0_i32, %arg1 : i32, i32
  }
  func.func @transform_4(%arg0: i32, %arg1: i32) -> (i32, i32) {
    %c0_i32 = arith.constant 0 : i32
    %c0_i32_0 = arith.constant 0 : i32
    return %c0_i32, %arg1 : i32, i32
  }
  func.func @transform_5(%arg0: i32, %arg1: i32) -> (i32, i32) {
    %c0_i32 = arith.constant 0 : i32
    return %arg0, %arg1 : i32, i32
  }
}

</mosaic_0001>

<llo_original>
// kernel: onnx_decoder_forward.14
$region0: #{onnx_decoder_forward.14}
  #allocation0 [shape = 'u32[]', space=smem, size = 0x4, offset = 0x4, fixed_abs, tag = 'smem constant byte address 0x4 - core index']
  #allocation1 [shape = 'u32[72,128]{1,0:T(1,128)}', space=vmem, size = 0x9000, scoped, tag = 'internal scratch']
  #allocation2 [shape = 'bf16[16,32]{1,0:T(8,128)(2,1)}', space=vmem, size = 0x1000, scoped, tag = 'scratch operand']
  %s0 = inlined_call_operand.vmem [shape: f32[16,32], index: 0, kind: input, shape index: {}]
  %s1 = inlined_call_operand.vmem [shape: f32[1,32], index: 1, kind: input, shape index: {}]
  %s2 = inlined_call_operand.vmem [shape: f32[1,32], index: 2, kind: input, shape index: {}]
  %s3 = inlined_call_operand.vmem [shape: bf16[32,128], index: 3, kind: input, shape index: {}]
  %s4 = inlined_call_operand.vmem [shape: f32[1,128], index: 4, kind: input, shape index: {}]
  %s5 = inlined_call_operand.vmem [shape: bf16[16,128], index: 5, kind: output, shape index: {}]
  %s6 = sld [smem:[#allocation0]]
  $region34: #{onnx_decoder_forward.14} parent=0
    _
  %s8 = ssub.s32 1, %s6
  %s9 = scalar_select 0, %s8, %s6
  // Predicated region
  $region2: #{onnx_decoder_forward.14} parent=0 // pred_check
    _
  $region3: #{onnx_decoder_forward.14} parent=0 // pred_check_branch
    %11 = sbr.rel (0) target = $region5
  $region4: #{onnx_decoder_forward.14} parent=0 // pred_region
    _
  $region5: #{onnx_decoder_forward.14} parent=0 // pred_fallthru
    _
  // Predicated region
  $region6: #{onnx_decoder_forward.14} parent=0 // pred_check
    _
  $region7: #{onnx_decoder_forward.14} parent=0 // pred_check_branch
    %13 = sbr.rel (0) target = $region9
  $region8: #{onnx_decoder_forward.14} parent=0 // pred_region
    _
  $region9: #{onnx_decoder_forward.14} parent=0 // pred_fallthru
    _
  // Predicated region
  $region10: #{onnx_decoder_forward.14} parent=0 // pred_check
    _
  $region11: #{onnx_decoder_forward.14} parent=0 // pred_check_branch
    %15 = sbr.rel (0) target = $region13
  $region12: #{onnx_decoder_forward.14} parent=0 // pred_region
    _
  $region13: #{onnx_decoder_forward.14} parent=0 // pred_fallthru
    _
  // Predicated region
  $region14: #{onnx_decoder_forward.14} parent=0 // pred_check
    _
  $region15: #{onnx_decoder_forward.14} parent=0 // pred_check_branch
    %17 = sbr.rel (0) target = $region17
  $region16: #{onnx_decoder_forward.14} parent=0 // pred_region
    _
  $region17: #{onnx_decoder_forward.14} parent=0 // pred_fallthru
    _
  // Predicated region
  $region18: #{onnx_decoder_forward.14} parent=0 // pred_check
    _
  $region19: #{onnx_decoder_forward.14} parent=0 // pred_check_branch
    %19 = sbr.rel (0) target = $region21
  $region20: #{onnx_decoder_forward.14} parent=0 // pred_region
    _
  $region21: #{onnx_decoder_forward.14} parent=0 // pred_fallthru
    _
  %p21 = scmp.eq.s32.totalorder 0, 0
  // Predicated region
  $region22: #{onnx_decoder_forward.14} parent=0 // pred_check
    %p22 = pneg %p21
  $region23: #{onnx_decoder_forward.14} parent=0 // pred_check_branch
    %24 = sbr.rel (%p22) target = $region25
  $region24: #{onnx_decoder_forward.14} parent=0 // pred_region
    %v25 = vld [vmem:[%s0] sm:$0xff]
    %v26 = vld [vmem:[%s0 + $0x8] sm:$0xff]
    %vm27 = vcmask 261120
    %v28 = vsel %vm27, %v25, 0.0
    %29 = vadd.xlane.f32.xlu0 %v28
    %v30 = vpop.xlane.xlu0 %29
    %v31 = vsel %vm27, %v26, 0.0
    %32 = vadd.xlane.f32.xlu0 %v31
    %v33 = vpop.xlane.xlu0 %32
    %v34 = vrcp.pop 32.0
    %v35 = vmul.f32 32.0, %v34
    %v36 = vsub.f32 1.0, %v35
    %v37 = vmul.f32 %v34, %v36
    %v38 = vadd.f32 %v34, %v37
    %vm39 = vweird.f32 %v34
    %v40 = vsel %vm39, %v34, %v38
    %v41 = vmul.f32 %v30, %v40
    %v42 = vmul.f32 %v33, %v40
    %v43 = vsub.f32 %v25, %v41
    %v44 = vsub.f32 %v26, %v42
    %v45 = vmul.f32 %v43, %v43
    %v46 = vmul.f32 %v44, %v44
    %v47 = vsel %vm27, %v45, 0.0
    %48 = vadd.xlane.f32.xlu0 %v47
    %v49 = vpop.xlane.xlu0 %48
    %v50 = vsel %vm27, %v46, 0.0
    %51 = vadd.xlane.f32.xlu0 %v50
    %v52 = vpop.xlane.xlu0 %51
    %v53 = vmul.f32 %v49, %v40
    %v54 = vmul.f32 %v52, %v40
    %v55 = vadd.f32 %v53, 1e-05
    %v56 = vadd.f32 %v54, 1e-05
    %v57 = vrsqrt.pop %v55
    %v58 = vmul.f32 %v57, %v55
    %v59 = vmul.f32 %v58, %v57
    %v60 = vmul.f32 0.5, %v59
    %v61 = vsub.f32 1.5, %v60
    %v62 = vmul.f32 %v57, %v61
    %vm63 = vweird.f32 %v55
    %vm64 = vweird.f32 %v57
    %vm65 = vmor %vm63, %vm64
    %v66 = vsel %vm65, %v57, %v62
    %v67 = vrsqrt.pop %v56
    %v68 = vmul.f32 %v67, %v56
    %v69 = vmul.f32 %v68, %v67
    %v70 = vmul.f32 0.5, %v69
    %v71 = vsub.f32 1.5, %v70
    %v72 = vmul.f32 %v67, %v71
    %vm73 = vweird.f32 %v56
    %vm74 = vweird.f32 %v67
    %vm75 = vmor %vm73, %vm74
    %v76 = vsel %vm75, %v67, %v72
    %v77 = vmul.f32 %v43, %v66
    %v78 = vmul.f32 %v44, %v76
    %v79 = vld [vmem:[%s1] sm:$0x1]
    %v81 = vperm.slane %v79, 0
    %v83 = vmul.f32 %v77, %v81
    %v84 = vmul.f32 %v78, %v81
    %v85 = vld [vmem:[%s2] sm:$0x1]
    %v87 = vperm.slane %v85, 0
    %v89 = vadd.f32 %v83, %v87
    %v90 = vadd.f32 %v84, %v87
    %v91 = vpack.c.bf16 %v89, %v89
    %v92 = vpack.c.bf16 %v90, %v90
    %vm93 = vcmask 257024
    %94 = vst.msk [vmem:[#allocation2] sm:$0xf] %vm93, %v91
    %95 = vst.msk [vmem:[#allocation2 + $0x4] sm:$0xf] %vm93, %v92
  $region25: #{onnx_decoder_forward.14} parent=0 // pred_fallthru
    _
  %v96 = vld [vmem:[#allocation2] sm:$0xf]
  %v97 = vld [vmem:[#allocation2 + $0x4] sm:$0xf]
  %v98 = vld [vmem:[%s3] sm:$0xf]
  %v99 = vld [vmem:[%s3 + $0x4] sm:$0xf]
  %v100 = vld [vmem:[%s3 + $0x8] sm:$0xf]
  %v101 = vld [vmem:[%s3 + $0xc] sm:$0xf]
  %v102 = vld [vmem:[%s4] sm:$0x1]
  %v104 = vperm.slane %v102, 0
  %v108 = vunpack.c.l.b16 %v96
  %v109 = vunpack.c.l.b16 %v97
  %v110 = vpack.c.b16 %v109, %v108
  %v115 = vunpack.c.l.b16 %v98
  %v116 = vunpack.c.l.b16 %v99
  %v117 = vunpack.c.l.b16 %v100
  %v118 = vunpack.c.l.b16 %v101
  %v119 = vpack.c.b16 %v116, %v115
  %v120 = vpack.c.b16 %v118, %v117
  %vm123 = vcmask 261120
  %v125 = vsel %vm123, %v110, 0
  %127 = vmatpush.bf16.msra.mxu0 0
  %128 = vmatpush.bf16.msra.mxu0 0
  %129 = vmatpush.bf16.msra.mxu0 0
  %130 = vmatpush.bf16.msra.mxu0 0
  %131 = vmatpush.bf16.msra.mxu0 0
  %132 = vmatpush.bf16.msra.mxu0 0
  %133 = vmatpush.bf16.msra.mxu0 %v120
  %134 = vmatpush.bf16.msra.mxu0 %v119
  %135 = vmatmul.bf16.gmra.mxu0 %v125
  %v136 = vpop.f32.mrf.mxu0
  %v137 = vadd.f32 %v104, %v136
  %v138 = vpop.f32.mrf.mxu0
  %v139 = vadd.f32 %v104, %v138
  %140 = vdwg.mxu0
  %v141 = vmul.f32 %v137, %v137
  %v142 = vmul.f32 %v139, %v139
  %v143 = vmul.f32 %v137, %v141
  %v144 = vmul.f32 %v139, %v142
  %v145 = vmul.f32 %v143, 0.044715
  %v146 = vmul.f32 %v144, 0.044715
  %v147 = vadd.f32 %v137, %v145
  %v148 = vadd.f32 %v139, %v146
  %v149 = vmul.f32 %v147, 0.7978846
  %v150 = vmul.f32 %v148, 0.7978846
  %v151 = vtanh.pop %v149
  %v152 = vtanh.pop %v150
  %v153 = vadd.f32 %v151, 1.0
  %v154 = vadd.f32 %v152, 1.0
  %v155 = vmul.f32 %v153, 0.5
  %v156 = vmul.f32 %v154, 0.5
  %v157 = vmul.f32 %v137, %v155
  %v158 = vmul.f32 %v139, %v156
  %v159 = vpack.c.bf16 %v157, %v157
  %v160 = vpack.c.bf16 %v158, %v158
  %161 = vst [vmem:[%s5] sm:$0xf] %v159
  %162 = vst [vmem:[%s5 + $0x4] sm:$0xf] %v160
  // Predicated region
  $region26: #{onnx_decoder_forward.14} parent=0 // pred_check
    _
  $region27: #{onnx_decoder_forward.14} parent=0 // pred_check_branch
    %164 = sbr.rel (0) target = $region29
  $region28: #{onnx_decoder_forward.14} parent=0 // pred_region
    _
  $region29: #{onnx_decoder_forward.14} parent=0 // pred_fallthru
    _
  // Predicated region
  $region30: #{onnx_decoder_forward.14} parent=0 // pred_check
    _
  $region31: #{onnx_decoder_forward.14} parent=0 // pred_check_branch
    %166 = sbr.rel (0) target = $region33
  $region32: #{onnx_decoder_forward.14} parent=0 // pred_region
    _
  $region33: #{onnx_decoder_forward.14} parent=0 // pred_fallthru
    _

// kernel: onnx_decoder_forward.11
$region0: #{onnx_decoder_forward.11}
  #allocation0 [shape = 'u32[]', space=smem, size = 0x4, offset = 0x4, fixed_abs, tag = 'smem constant byte address 0x4 - core index']
  #allocation1 [shape = 'u32[72,128]{1,0:T(1,128)}', space=vmem, size = 0x9000, scoped, tag = 'internal scratch']
  #allocation2 [shape = 'bf16[16,32]{1,0:T(8,128)(2,1)}', space=vmem, size = 0x1000, scoped, tag = 'scratch operand']
  %s0 = inlined_call_operand.vmem [shape: f32[16,32], index: 0, kind: input, shape index: {}]
  %s1 = inlined_call_operand.vmem [shape: f32[1,32], index: 1, kind: input, shape index: {}]
  %s2 = inlined_call_operand.vmem [shape: f32[1,32], index: 2, kind: input, shape index: {}]
  %s3 = inlined_call_operand.vmem [shape: bf16[32,96], index: 3, kind: input, shape index: {}]
  %s4 = inlined_call_operand.vmem [shape: f32[1,96], index: 4, kind: input, shape index: {}]
  %s5 = inlined_call_operand.vmem [shape: f32[16,96], index: 5, kind: output, shape index: {}]
  %s6 = sld [smem:[#allocation0]]
  $region34: #{onnx_decoder_forward.11} parent=0
    _
  %s8 = ssub.s32 1, %s6
  %s9 = scalar_select 0, %s8, %s6
  // Predicated region
  $region2: #{onnx_decoder_forward.11} parent=0 // pred_check
    _
  $region3: #{onnx_decoder_forward.11} parent=0 // pred_check_branch
    %11 = sbr.rel (0) target = $region5
  $region4: #{onnx_decoder_forward.11} parent=0 // pred_region
    _
  $region5: #{onnx_decoder_forward.11} parent=0 // pred_fallthru
    _
  // Predicated region
  $region6: #{onnx_decoder_forward.11} parent=0 // pred_check
    _
  $region7: #{onnx_decoder_forward.11} parent=0 // pred_check_branch
    %13 = sbr.rel (0) target = $region9
  $region8: #{onnx_decoder_forward.11} parent=0 // pred_region
    _
  $region9: #{onnx_decoder_forward.11} parent=0 // pred_fallthru
    _
  // Predicated region
  $region10: #{onnx_decoder_forward.11} parent=0 // pred_check
    _
  $region11: #{onnx_decoder_forward.11} parent=0 // pred_check_branch
    %15 = sbr.rel (0) target = $region13
  $region12: #{onnx_decoder_forward.11} parent=0 // pred_region
    _
  $region13: #{onnx_decoder_forward.11} parent=0 // pred_fallthru
    _
  // Predicated region
  $region14: #{onnx_decoder_forward.11} parent=0 // pred_check
    _
  $region15: #{onnx_decoder_forward.11} parent=0 // pred_check_branch
    %17 = sbr.rel (0) target = $region17
  $region16: #{onnx_decoder_forward.11} parent=0 // pred_region
    _
  $region17: #{onnx_decoder_forward.11} parent=0 // pred_fallthru
    _
  // Predicated region
  $region18: #{onnx_decoder_forward.11} parent=0 // pred_check
    _
  $region19: #{onnx_decoder_forward.11} parent=0 // pred_check_branch
    %19 = sbr.rel (0) target = $region21
  $region20: #{onnx_decoder_forward.11} parent=0 // pred_region
    _
  $region21: #{onnx_decoder_forward.11} parent=0 // pred_fallthru
    _
  %p21 = scmp.eq.s32.totalorder 0, 0
  // Predicated region
  $region22: #{onnx_decoder_forward.11} parent=0 // pred_check
    %p22 = pneg %p21
  $region23: #{onnx_decoder_forward.11} parent=0 // pred_check_branch
    %24 = sbr.rel (%p22) target = $region25
  $region24: #{onnx_decoder_forward.11} parent=0 // pred_region
    %v25 = vld [vmem:[%s0] sm:$0xff]
    %v26 = vld [vmem:[%s0 + $0x8] sm:$0xff]
    %vm27 = vcmask 261120
    %v28 = vsel %vm27, %v25, 0.0
    %29 = vadd.xlane.f32.xlu0 %v28
    %v30 = vpop.xlane.xlu0 %29
    %v31 = vsel %vm27, %v26, 0.0
    %32 = vadd.xlane.f32.xlu0 %v31
    %v33 = vpop.xlane.xlu0 %32
    %v34 = vrcp.pop 32.0
    %v35 = vmul.f32 32.0, %v34
    %v36 = vsub.f32 1.0, %v35
    %v37 = vmul.f32 %v34, %v36
    %v38 = vadd.f32 %v34, %v37
    %vm39 = vweird.f32 %v34
    %v40 = vsel %vm39, %v34, %v38
    %v41 = vmul.f32 %v30, %v40
    %v42 = vmul.f32 %v33, %v40
    %v43 = vsub.f32 %v25, %v41
    %v44 = vsub.f32 %v26, %v42
    %v45 = vmul.f32 %v43, %v43
    %v46 = vmul.f32 %v44, %v44
    %v47 = vsel %vm27, %v45, 0.0
    %48 = vadd.xlane.f32.xlu0 %v47
    %v49 = vpop.xlane.xlu0 %48
    %v50 = vsel %vm27, %v46, 0.0
    %51 = vadd.xlane.f32.xlu0 %v50
    %v52 = vpop.xlane.xlu0 %51
    %v53 = vmul.f32 %v49, %v40
    %v54 = vmul.f32 %v52, %v40
    %v55 = vadd.f32 %v53, 1e-05
    %v56 = vadd.f32 %v54, 1e-05
    %v57 = vrsqrt.pop %v55
    %v58 = vmul.f32 %v57, %v55
    %v59 = vmul.f32 %v58, %v57
    %v60 = vmul.f32 0.5, %v59
    %v61 = vsub.f32 1.5, %v60
    %v62 = vmul.f32 %v57, %v61
    %vm63 = vweird.f32 %v55
    %vm64 = vweird.f32 %v57
    %vm65 = vmor %vm63, %vm64
    %v66 = vsel %vm65, %v57, %v62
    %v67 = vrsqrt.pop %v56
    %v68 = vmul.f32 %v67, %v56
    %v69 = vmul.f32 %v68, %v67
    %v70 = vmul.f32 0.5, %v69
    %v71 = vsub.f32 1.5, %v70
    %v72 = vmul.f32 %v67, %v71
    %vm73 = vweird.f32 %v56
    %vm74 = vweird.f32 %v67
    %vm75 = vmor %vm73, %vm74
    %v76 = vsel %vm75, %v67, %v72
    %v77 = vmul.f32 %v43, %v66
    %v78 = vmul.f32 %v44, %v76
    %v79 = vld [vmem:[%s1] sm:$0x1]
    %v81 = vperm.slane %v79, 0
    %v83 = vmul.f32 %v77, %v81
    %v84 = vmul.f32 %v78, %v81
    %v85 = vld [vmem:[%s2] sm:$0x1]
    %v87 = vperm.slane %v85, 0
    %v89 = vadd.f32 %v83, %v87
    %v90 = vadd.f32 %v84, %v87
    %v91 = vpack.c.bf16 %v89, %v89
    %v92 = vpack.c.bf16 %v90, %v90
    %vm93 = vcmask 257024
    %94 = vst.msk [vmem:[#allocation2] sm:$0xf] %vm93, %v91
    %95 = vst.msk [vmem:[#allocation2 + $0x4] sm:$0xf] %vm93, %v92
  $region25: #{onnx_decoder_forward.11} parent=0 // pred_fallthru
    _
  %v96 = vld [vmem:[#allocation2] sm:$0xf]
  %v97 = vld [vmem:[#allocation2 + $0x4] sm:$0xf]
  %v98 = vld [vmem:[%s3] sm:$0xf]
  %v99 = vld [vmem:[%s3 + $0x4] sm:$0xf]
  %v100 = vld [vmem:[%s3 + $0x8] sm:$0xf]
  %v101 = vld [vmem:[%s3 + $0xc] sm:$0xf]
  %v102 = vld [vmem:[%s4] sm:$0x1]
  %v104 = vperm.slane %v102, 0
  %v108 = vunpack.c.l.b16 %v96
  %v109 = vunpack.c.l.b16 %v97
  %v110 = vpack.c.b16 %v109, %v108
  %v115 = vunpack.c.l.b16 %v98
  %v116 = vunpack.c.l.b16 %v99
  %v117 = vunpack.c.l.b16 %v100
  %v118 = vunpack.c.l.b16 %v101
  %v119 = vpack.c.b16 %v116, %v115
  %v120 = vpack.c.b16 %v118, %v117
  %vm123 = vcmask 261120
  %v125 = vsel %vm123, %v110, 0
  %127 = vmatpush.bf16.msra.mxu0 0
  %128 = vmatpush.bf16.msra.mxu0 0
  %129 = vmatpush.bf16.msra.mxu0 0
  %130 = vmatpush.bf16.msra.mxu0 0
  %131 = vmatpush.bf16.msra.mxu0 0
  %132 = vmatpush.bf16.msra.mxu0 0
  %133 = vmatpush.bf16.msra.mxu0 %v120
  %134 = vmatpush.bf16.msra.mxu0 %v119
  %135 = vmatmul.bf16.gmra.mxu0 %v125
  %v136 = vpop.f32.mrf.mxu0
  %v137 = vadd.f32 %v104, %v136
  %v138 = vpop.f32.mrf.mxu0
  %v139 = vadd.f32 %v104, %v138
  %140 = vdwg.mxu0
  %vm141 = vcmask 785408
  %142 = vst.msk [vmem:[%s5] sm:$0xff] %vm141, %v137
  %143 = vst.msk [vmem:[%s5 + $0x8] sm:$0xff] %vm141, %v139
  // Predicated region
  $region26: #{onnx_decoder_forward.11} parent=0 // pred_check
    _
  $region27: #{onnx_decoder_forward.11} parent=0 // pred_check_branch
    %145 = sbr.rel (0) target = $region29
  $region28: #{onnx_decoder_forward.11} parent=0 // pred_region
    _
  $region29: #{onnx_decoder_forward.11} parent=0 // pred_fallthru
    _
  // Predicated region
  $region30: #{onnx_decoder_forward.11} parent=0 // pred_check
    _
  $region31: #{onnx_decoder_forward.11} parent=0 // pred_check_branch
    %147 = sbr.rel (0) target = $region33
  $region32: #{onnx_decoder_forward.11} parent=0 // pred_region
    _
  $region33: #{onnx_decoder_forward.11} parent=0 // pred_fallthru
    _

// kernel: onnx_decoder_forward.12
$region0: #{onnx_decoder_forward.12}
  #allocation0 [shape = 'u32[]', space=smem, size = 0x4, offset = 0x4, fixed_abs, tag = 'smem constant byte address 0x4 - core index']
  #allocation1 [shape = 'u32[72,128]{1,0:T(1,128)}', space=vmem, size = 0x9000, scoped, tag = 'internal scratch']
  %s0 = inlined_call_operand.vmem [shape: f32[2,2,8,16], index: 0, kind: input, shape index: {}]
  %s1 = inlined_call_operand.vmem [shape: f32[2,2,8,16], index: 1, kind: input, shape index: {}]
  %s2 = inlined_call_operand.vmem [shape: f32[2,2,8,16], index: 2, kind: input, shape index: {}]
  %s3 = inlined_call_operand.vmem [shape: f32[2,2,8,16], index: 3, kind: input, shape index: {}]
  %s4 = inlined_call_operand.vmem [shape: f32[2,2,8,16], index: 4, kind: input, shape index: {}]
  %s5 = inlined_call_operand.vmem [shape: bf16[2,2,8,16], index: 5, kind: output, shape index: {}]
  %s6 = sld [smem:[#allocation0]]
  $region53: #{onnx_decoder_forward.12} parent=0
    _
  %s8 = ssub.s32 1, %s6
  %s9 = scalar_select 0, %s8, %s6
  loop: start=0, step=1, limit=6
  $region2: #{onnx_decoder_forward.12} parent=0 // loop_pre_header
    _
  $region3: #{onnx_decoder_forward.12} parent=0 // loop_header
    %s11 = sphi 0, %s15
    %p12 = scmp.ge.s32.totalorder %s11, 6
    %s18 = sphi 0, %s30
    %s19 = sphi 0, %s26
    %s20 = sphi 0, %s18
    %s21 = sphi 0, %s19
    %s22 = sphi 0, %s20
    %s23 = sphi 0, %s21
    %s35 = sphi 0, %s37
    %s38 = sphi 0, %s35
    %s39 = sphi 0, %s38
    %s55 = sphi 0, %s39
    %s63 = sphi 0, %s65
    %s66 = sphi 0, %s63
    %s67 = sphi 0, %s66
    %s83 = sphi 0, %s67
    %s91 = sphi 0, %s93
    %s94 = sphi 0, %s91
    %s95 = sphi 0, %s94
    %s111 = sphi 0, %s95
    %s119 = sphi 0, %s121
    %s122 = sphi 0, %s119
    %s123 = sphi 0, %s122
    %s139 = sphi 0, %s123
    %s147 = sphi 0, %s149
    %s150 = sphi 0, %s147
    %s151 = sphi 0, %s150
    %s167 = sphi 0, %s151
    %s175 = sphi 0, %s177
    %s178 = sphi 0, %s175
    %s179 = sphi 0, %s178
    %s195 = sphi 0, %s179
  $region4: #{onnx_decoder_forward.12} parent=0 // loop_header_branch
    %14 = sbr.rel (%p12) target = $region8
  $region5: #{onnx_decoder_forward.12} parent=0 // loop_body
    %s16 = ssub.s32 %s11, 1
    %s17 = ssub.s32 %s11, 2
    %s24 = sadd.s32 1, %s19
    %p25 = scmp.ge.s32.totalorder %s24, 2
    %s26 = scalar_select %p25, 0, %s24
    %s27 = sadd.s32 1, %s18
    %s28 = scalar_select %p25, %s27, %s18
    %p29 = scmp.ge.s32.totalorder %s28, 2
    %s30 = scalar_select %p29, 0, %s28
    %s31 = ssub.s32 %s18, %s30
    %s32 = ssub.s32 %s19, %s26
    %s33 = sor.u32 %s31, %s32
    %p34 = scmp.eq.s32.totalorder %s33, 0
    %s36 = sadd.s32 %s35, 1
    %s37 = scalar_select %p34, %s35, %s36
    %p40 = pneg %p34
    %p41 = scmp.eq.s32.totalorder %s11, 3
    %p42 = por %p40, %p41
    %p43 = scmp.ne.s32.totalorder %s35, %s38
    %p44 = scmp.eq.s32.totalorder %s11, 0
    %p45 = por %p43, %p44
    %p46 = scmp.ne.s32.totalorder %s35, %s38
    %p47 = scmp.eq.s32.totalorder %s16, 3
    %p48 = por %p46, %p47
    %p49 = scmp.ne.s32.totalorder %s38, %s39
    %p50 = scmp.eq.s32.totalorder %s16, 0
    %p51 = por %p49, %p50
    %p52 = scmp.ne.s32.totalorder %s38, %s39
    %p53 = scmp.eq.s32.totalorder %s17, 3
    %p54 = por %p52, %p53
    %p56 = scmp.ne.s32.totalorder %s39, %s55
    %p57 = scmp.eq.s32.totalorder %s17, 0
    %p58 = por %p56, %p57
    %s59 = ssub.s32 %s18, %s30
    %s60 = ssub.s32 %s19, %s26
    %s61 = sor.u32 %s59, %s60
    %p62 = scmp.eq.s32.totalorder %s61, 0
    %s64 = sadd.s32 %s63, 1
    %s65 = scalar_select %p62, %s63, %s64
    %p68 = pneg %p62
    %p69 = scmp.eq.s32.totalorder %s11, 3
    %p70 = por %p68, %p69
    %p71 = scmp.ne.s32.totalorder %s63, %s66
    %p72 = scmp.eq.s32.totalorder %s11, 0
    %p73 = por %p71, %p72
    %p74 = scmp.ne.s32.totalorder %s63, %s66
    %p75 = scmp.eq.s32.totalorder %s16, 3
    %p76 = por %p74, %p75
    %p77 = scmp.ne.s32.totalorder %s66, %s67
    %p78 = scmp.eq.s32.totalorder %s16, 0
    %p79 = por %p77, %p78
    %p80 = scmp.ne.s32.totalorder %s66, %s67
    %p81 = scmp.eq.s32.totalorder %s17, 3
    %p82 = por %p80, %p81
    %p84 = scmp.ne.s32.totalorder %s67, %s83
    %p85 = scmp.eq.s32.totalorder %s17, 0
    %p86 = por %p84, %p85
    %s87 = ssub.s32 %s18, %s30
    %s88 = ssub.s32 %s19, %s26
    %s89 = sor.u32 %s87, %s88
    %p90 = scmp.eq.s32.totalorder %s89, 0
    %s92 = sadd.s32 %s91, 1
    %s93 = scalar_select %p90, %s91, %s92
    %p96 = pneg %p90
    %p97 = scmp.eq.s32.totalorder %s11, 3
    %p98 = por %p96, %p97
    %p99 = scmp.ne.s32.totalorder %s91, %s94
    %p100 = scmp.eq.s32.totalorder %s11, 0
    %p101 = por %p99, %p100
    %p102 = scmp.ne.s32.totalorder %s91, %s94
    %p103 = scmp.eq.s32.totalorder %s16, 3
    %p104 = por %p102, %p103
    %p105 = scmp.ne.s32.totalorder %s94, %s95
    %p106 = scmp.eq.s32.totalorder %s16, 0
    %p107 = por %p105, %p106
    %p108 = scmp.ne.s32.totalorder %s94, %s95
    %p109 = scmp.eq.s32.totalorder %s17, 3
    %p110 = por %p108, %p109
    %p112 = scmp.ne.s32.totalorder %s95, %s111
    %p113 = scmp.eq.s32.totalorder %s17, 0
    %p114 = por %p112, %p113
    %s115 = ssub.s32 %s18, %s30
    %s116 = ssub.s32 %s19, %s26
    %s117 = sor.u32 %s115, %s116
    %p118 = scmp.eq.s32.totalorder %s117, 0
    %s120 = sadd.s32 %s119, 1
    %s121 = scalar_select %p118, %s119, %s120
    %p124 = pneg %p118
    %p125 = scmp.eq.s32.totalorder %s11, 3
    %p126 = por %p124, %p125
    %p127 = scmp.ne.s32.totalorder %s119, %s122
    %p128 = scmp.eq.s32.totalorder %s11, 0
    %p129 = por %p127, %p128
    %p130 = scmp.ne.s32.totalorder %s119, %s122
    %p131 = scmp.eq.s32.totalorder %s16, 3
    %p132 = por %p130, %p131
    %p133 = scmp.ne.s32.totalorder %s122, %s123
    %p134 = scmp.eq.s32.totalorder %s16, 0
    %p135 = por %p133, %p134
    %p136 = scmp.ne.s32.totalorder %s122, %s123
    %p137 = scmp.eq.s32.totalorder %s17, 3
    %p138 = por %p136, %p137
    %p140 = scmp.ne.s32.totalorder %s123, %s139
    %p141 = scmp.eq.s32.totalorder %s17, 0
    %p142 = por %p140, %p141
    %s143 = ssub.s32 %s18, %s30
    %s144 = ssub.s32 %s19, %s26
    %s145 = sor.u32 %s143, %s144
    %p146 = scmp.eq.s32.totalorder %s145, 0
    %s148 = sadd.s32 %s147, 1
    %s149 = scalar_select %p146, %s147, %s148
    %p152 = pneg %p146
    %p153 = scmp.eq.s32.totalorder %s11, 3
    %p154 = por %p152, %p153
    %p155 = scmp.ne.s32.totalorder %s147, %s150
    %p156 = scmp.eq.s32.totalorder %s11, 0
    %p157 = por %p155, %p156
    %p158 = scmp.ne.s32.totalorder %s147, %s150
    %p159 = scmp.eq.s32.totalorder %s16, 3
    %p160 = por %p158, %p159
    %p161 = scmp.ne.s32.totalorder %s150, %s151
    %p162 = scmp.eq.s32.totalorder %s16, 0
    %p163 = por %p161, %p162
    %p164 = scmp.ne.s32.totalorder %s150, %s151
    %p165 = scmp.eq.s32.totalorder %s17, 3
    %p166 = por %p164, %p165
    %p168 = scmp.ne.s32.totalorder %s151, %s167
    %p169 = scmp.eq.s32.totalorder %s17, 0
    %p170 = por %p168, %p169
    %s171 = ssub.s32 %s18, %s30
    %s172 = ssub.s32 %s19, %s26
    %s173 = sor.u32 %s171, %s172
    %p174 = scmp.eq.s32.totalorder %s173, 0
    %s176 = sadd.s32 %s175, 1
    %s177 = scalar_select %p174, %s175, %s176
    %p180 = pneg %p174
    %p181 = scmp.eq.s32.totalorder %s11, 3
    %p182 = por %p180, %p181
    %p183 = scmp.ne.s32.totalorder %s175, %s178
    %p184 = scmp.eq.s32.totalorder %s11, 0
    %p185 = por %p183, %p184
    %p186 = scmp.ne.s32.totalorder %s175, %s178
    %p187 = scmp.eq.s32.totalorder %s16, 3
    %p188 = por %p186, %p187
    %p189 = scmp.ne.s32.totalorder %s178, %s179
    %p190 = scmp.eq.s32.totalorder %s16, 0
    %p191 = por %p189, %p190
    %p192 = scmp.ne.s32.totalorder %s178, %s179
    %p193 = scmp.eq.s32.totalorder %s17, 3
    %p194 = por %p192, %p193
    %p196 = scmp.ne.s32.totalorder %s179, %s195
    %p197 = scmp.eq.s32.totalorder %s17, 0
    %p198 = por %p196, %p197
    %p199 = scmp.le.s32.totalorder 1, %s11
    %p200 = scmp.lt.s32.totalorder %s11, 5
    %p201 = pnand %p199, %p200
    %p202 = pneg %p201
    // Predicated region
    $region9: #{onnx_decoder_forward.12} parent=5 // pred_check
      _
    $region10: #{onnx_decoder_forward.12} parent=5 // pred_check_branch
      %204 = sbr.rel (%p201) target = $region12
    $region11: #{onnx_decoder_forward.12} parent=5 // pred_region
      %s205 = ssub.s32 %s11, 1
    $region12: #{onnx_decoder_forward.12} parent=5 // pred_fallthru
      _
    %p206 = scmp.lt.s32.totalorder %s11, 4
    // Predicated region
    $region13: #{onnx_decoder_forward.12} parent=5 // pred_check
      %p207 = pneg %p206
    $region14: #{onnx_decoder_forward.12} parent=5 // pred_check_branch
      %209 = sbr.rel (%p207) target = $region16
    $region15: #{onnx_decoder_forward.12} parent=5 // pred_region
      // Predicated region
      $region17: #{onnx_decoder_forward.12} parent=15 // pred_check
        %p210 = pneg %p45
      $region18: #{onnx_decoder_forward.12} parent=15 // pred_check_branch
        %212 = sbr.rel (%p210) target = $region20
      $region19: #{onnx_decoder_forward.12} parent=15 // pred_region
        %p213 = scmp.lt.s32.totalorder %s18, 1
        %s214 = scalar_select %p213, %s18, 1
        %p215 = scmp.lt.s32.totalorder %s19, 1
        %s216 = scalar_select %p215, %s19, 1
        %s217 = smul.addr %s214, 2
        %s218 = sadd.s32 %s216, %s217
        %s219 = smul.addr %s218, 8
        %s220 = scalar_lea.vmem %s0, %s219
      $region20: #{onnx_decoder_forward.12} parent=15 // pred_fallthru
        _
      // Predicated region
      $region21: #{onnx_decoder_forward.12} parent=15 // pred_check
        %p221 = pneg %p73
      $region22: #{onnx_decoder_forward.12} parent=15 // pred_check_branch
        %223 = sbr.rel (%p221) target = $region24
      $region23: #{onnx_decoder_forward.12} parent=15 // pred_region
        %p224 = scmp.lt.s32.totalorder %s18, 1
        %s225 = scalar_select %p224, %s18, 1
        %p226 = scmp.lt.s32.totalorder %s19, 1
        %s227 = scalar_select %p226, %s19, 1
        %s228 = smul.addr %s225, 2
        %s229 = sadd.s32 %s227, %s228
        %s230 = smul.addr %s229, 8
        %s231 = scalar_lea.vmem %s1, %s230
      $region24: #{onnx_decoder_forward.12} parent=15 // pred_fallthru
        _
      // Predicated region
      $region25: #{onnx_decoder_forward.12} parent=15 // pred_check
        %p232 = pneg %p101
      $region26: #{onnx_decoder_forward.12} parent=15 // pred_check_branch
        %234 = sbr.rel (%p232) target = $region28
      $region27: #{onnx_decoder_forward.12} parent=15 // pred_region
        %p235 = scmp.lt.s32.totalorder %s18, 1
        %s236 = scalar_select %p235, %s18, 1
        %p237 = scmp.lt.s32.totalorder %s19, 1
        %s238 = scalar_select %p237, %s19, 1
        %s239 = smul.addr %s236, 2
        %s240 = sadd.s32 %s238, %s239
        %s241 = smul.addr %s240, 8
        %s242 = scalar_lea.vmem %s2, %s241
      $region28: #{onnx_decoder_forward.12} parent=15 // pred_fallthru
        _
      // Predicated region
      $region29: #{onnx_decoder_forward.12} parent=15 // pred_check
        %p243 = pneg %p129
      $region30: #{onnx_decoder_forward.12} parent=15 // pred_check_branch
        %245 = sbr.rel (%p243) target = $region32
      $region31: #{onnx_decoder_forward.12} parent=15 // pred_region
        %p246 = scmp.lt.s32.totalorder %s18, 1
        %s247 = scalar_select %p246, %s18, 1
        %p248 = scmp.lt.s32.totalorder %s19, 1
        %s249 = scalar_select %p248, %s19, 1
        %s250 = smul.addr %s247, 2
        %s251 = sadd.s32 %s249, %s250
        %s252 = smul.addr %s251, 8
        %s253 = scalar_lea.vmem %s3, %s252
      $region32: #{onnx_decoder_forward.12} parent=15 // pred_fallthru
        _
      // Predicated region
      $region33: #{onnx_decoder_forward.12} parent=15 // pred_check
        %p254 = pneg %p157
      $region34: #{onnx_decoder_forward.12} parent=15 // pred_check_branch
        %256 = sbr.rel (%p254) target = $region36
      $region35: #{onnx_decoder_forward.12} parent=15 // pred_region
        %p257 = scmp.lt.s32.totalorder %s18, 1
        %s258 = scalar_select %p257, %s18, 1
        %p259 = scmp.lt.s32.totalorder %s19, 1
        %s260 = scalar_select %p259, %s19, 1
        %s261 = smul.addr %s258, 2
        %s262 = sadd.s32 %s260, %s261
        %s263 = smul.addr %s262, 8
        %s264 = scalar_lea.vmem %s4, %s263
      $region36: #{onnx_decoder_forward.12} parent=15 // pred_fallthru
        _
    $region16: #{onnx_decoder_forward.12} parent=5 // pred_fallthru
      _
    %p265 = scmp.le.s32.totalorder 1, %s11
    %p266 = scmp.lt.s32.totalorder %s11, 5
    %p267 = pnand %p265, %p266
    %p268 = pneg %p267
    // Predicated region
    $region37: #{onnx_decoder_forward.12} parent=5 // pred_check
      _
    $region38: #{onnx_decoder_forward.12} parent=5 // pred_check_branch
      %270 = sbr.rel (%p267) target = $region40
    $region39: #{onnx_decoder_forward.12} parent=5 // pred_region
      %s271 = ssub.s32 %s11, 1
      %p272 = scmp.lt.s32.totalorder %s20, 1
      %s273 = scalar_select %p272, %s20, 1
      %p274 = scmp.lt.s32.totalorder %s21, 1
      %s275 = scalar_select %p274, %s21, 1
      %s276 = smul.addr %s273, 2
      %s277 = sadd.s32 %s275, %s276
      %s278 = smul.addr %s277, 8
      %s279 = scalar_lea.vmem %s0, %s278
      %p280 = pneg %p51
      %p281 = pneg %p48
      %p282 = scmp.lt.s32.totalorder %s20, 1
      %s283 = scalar_select %p282, %s20, 1
      %p284 = scmp.lt.s32.totalorder %s21, 1
      %s285 = scalar_select %p284, %s21, 1
      %s286 = smul.addr %s283, 2
      %s287 = sadd.s32 %s285, %s286
      %s288 = smul.addr %s287, 8
      %s289 = scalar_lea.vmem %s1, %s288
      %p290 = pneg %p79
      %p291 = pneg %p76
      %p292 = scmp.lt.s32.totalorder %s20, 1
      %s293 = scalar_select %p292, %s20, 1
      %p294 = scmp.lt.s32.totalorder %s21, 1
      %s295 = scalar_select %p294, %s21, 1
      %s296 = smul.addr %s293, 2
      %s297 = sadd.s32 %s295, %s296
      %s298 = smul.addr %s297, 8
      %s299 = scalar_lea.vmem %s2, %s298
      %p300 = pneg %p107
      %p301 = pneg %p104
      %p302 = scmp.lt.s32.totalorder %s20, 1
      %s303 = scalar_select %p302, %s20, 1
      %p304 = scmp.lt.s32.totalorder %s21, 1
      %s305 = scalar_select %p304, %s21, 1
      %s306 = smul.addr %s303, 2
      %s307 = sadd.s32 %s305, %s306
      %s308 = smul.addr %s307, 8
      %s309 = scalar_lea.vmem %s3, %s308
      %p310 = pneg %p135
      %p311 = pneg %p132
      %p312 = scmp.lt.s32.totalorder %s20, 1
      %s313 = scalar_select %p312, %s20, 1
      %p314 = scmp.lt.s32.totalorder %s21, 1
      %s315 = scalar_select %p314, %s21, 1
      %s316 = smul.addr %s313, 2
      %s317 = sadd.s32 %s315, %s316
      %s318 = smul.addr %s317, 8
      %s319 = scalar_lea.vmem %s4, %s318
      %p320 = pneg %p163
      %p321 = pneg %p160
      %p322 = pneg %p191
      %p323 = pneg %p188
      %p324 = scmp.lt.s32.totalorder %s20, 1
      %s325 = scalar_select %p324, %s20, 1
      %p326 = scmp.lt.s32.totalorder %s21, 1
      %s327 = scalar_select %p326, %s21, 1
      %s328 = smul.addr %s325, 2
      %s329 = sadd.s32 %s327, %s328
      %s330 = smul.addr %s329, 4
      %s331 = scalar_lea.vmem %s5, %s330
      %p332 = scmp.lt.s32.totalorder %s20, 1
      %s333 = scalar_select %p332, %s20, 1
      %p334 = scmp.lt.s32.totalorder %s21, 1
      %s335 = scalar_select %p334, %s21, 1
      %s336 = smul.addr %s333, 2
      %s337 = sadd.s32 %s335, %s336
      %s338 = smul.addr %s337, 8
      %s339 = scalar_lea.vmem %s0, %s338
      %p340 = scmp.lt.s32.totalorder %s20, 1
      %s341 = scalar_select %p340, %s20, 1
      %p342 = scmp.lt.s32.totalorder %s21, 1
      %s343 = scalar_select %p342, %s21, 1
      %s344 = smul.addr %s341, 2
      %s345 = sadd.s32 %s343, %s344
      %s346 = smul.addr %s345, 8
      %s347 = scalar_lea.vmem %s1, %s346
      %p348 = scmp.lt.s32.totalorder %s20, 1
      %s349 = scalar_select %p348, %s20, 1
      %p350 = scmp.lt.s32.totalorder %s21, 1
      %s351 = scalar_select %p350, %s21, 1
      %s352 = smul.addr %s349, 2
      %s353 = sadd.s32 %s351, %s352
      %s354 = smul.addr %s353, 8
      %s355 = scalar_lea.vmem %s2, %s354
      %p356 = scmp.lt.s32.totalorder %s20, 1
      %s357 = scalar_select %p356, %s20, 1
      %p358 = scmp.lt.s32.totalorder %s21, 1
      %s359 = scalar_select %p358, %s21, 1
      %s360 = smul.addr %s357, 2
      %s361 = sadd.s32 %s359, %s360
      %s362 = smul.addr %s361, 8
      %s363 = scalar_lea.vmem %s3, %s362
      %p364 = scmp.lt.s32.totalorder %s20, 1
      %s365 = scalar_select %p364, %s20, 1
      %p366 = scmp.lt.s32.totalorder %s21, 1
      %s367 = scalar_select %p366, %s21, 1
      %s368 = smul.addr %s365, 2
      %s369 = sadd.s32 %s367, %s368
      %s370 = smul.addr %s369, 8
      %s371 = scalar_lea.vmem %s4, %s370
      %p372 = scmp.lt.s32.totalorder %s20, 1
      %s373 = scalar_select %p372, %s20, 1
      %p374 = scmp.lt.s32.totalorder %s21, 1
      %s375 = scalar_select %p374, %s21, 1
      %s376 = smul.addr %s373, 2
      %s377 = sadd.s32 %s375, %s376
      %s378 = smul.addr %s377, 4
      %s379 = scalar_lea.vmem %s5, %s378
      %v381 = vld [vmem:[%s339] sm:$0xff]
      %v382 = vmul.f32 %v381, 0.25
      %v383 = vpack.c.bf16 %v382, %v382
      %v384 = vld [vmem:[%s347] sm:$0xff]
      %v385 = vpack.c.bf16 %v384, %v384
      %v386 = vld [vmem:[%s355] sm:$0xff]
      %v387 = vpack.c.bf16 %v386, %v386
      %vm388 = vcmask 130048
      %v390 = vsel %vm388, %v383, 0
      %v393 = vsel %vm388, %v385, 0
      %395 = vmatpush.bf16.xpose.msra.mxu0 0
      %396 = vmatpush.bf16.xpose.msra.mxu0 0
      %397 = vmatpush.bf16.xpose.msra.mxu0 0
      %398 = vmatpush.bf16.xpose.msra.mxu0 0
      %399 = vmatpush.bf16.xpose.msra.mxu0 0
      %400 = vmatpush.bf16.xpose.msra.mxu0 0
      %401 = vmatpush.bf16.xpose.msra.mxu0 0
      %402 = vmatpush.bf16.xpose.msra.mxu0 %v393
      %403 = vmatmul.bf16.gmra.mxu0 %v390
      %v404 = vpop.f32.mrf.mxu0
      %v405 = vadd.f32 0.0, %v404
      %v406 = vpop.f32.mrf.mxu0
      %407 = vdwg.mxu0
      %v408 = vlaneseq
      %v409 = vshrl.u32 %v408, 7
      %v410 = vlaneseq
      %v411 = vand.u32 %v410, 127
      %vm412 = vcmp.le.s32.totalorder %v411, %v409
      %v413 = vsel %vm412, %v405, -1e+30
      %vm414 = vcmask 64512
      %v415 = vsel %vm414, %v413, -inf
      %416 = vmax.xlane.f32.xlu0 %v415
      %v417 = vpop.xlane.xlu0 %416
      %v418 = vld [vmem:[%s363] sm:$0xff]
      %v419 = vpack.c.bf16 %v418, %v418
      %v420 = vld [vmem:[%s371] sm:$0xff]
      %v421 = vpack.c.bf16 %v420, %v420
      %v423 = vsel %vm388, %v419, 0
      %425 = vmatpush.bf16.xpose.msra.mxu0 0
      %426 = vmatpush.bf16.xpose.msra.mxu0 0
      %427 = vmatpush.bf16.xpose.msra.mxu0 0
      %428 = vmatpush.bf16.xpose.msra.mxu0 0
      %429 = vmatpush.bf16.xpose.msra.mxu0 0
      %430 = vmatpush.bf16.xpose.msra.mxu0 0
      %431 = vmatpush.bf16.xpose.msra.mxu0 0
      %432 = vmatpush.bf16.xpose.msra.mxu0 %v423
      %433 = vmatmul.bf16.gmra.mxu0 %v390
      %v434 = vpop.f32.mrf.mxu0
      %v435 = vadd.f32 0.0, %v434
      %v436 = vpop.f32.mrf.mxu0
      %437 = vdwg.mxu0
      %v438 = vsel %vm414, %v435, -inf
      %439 = vmax.xlane.f32.xlu0 %v438
      %v440 = vpop.xlane.xlu0 %439
      %v441 = vmax.f32 %v417, %v440
      %v442 = vsub.f32 %v435, %v441
      %v443 = vmul.f32 %v442, 1.442695
      %v444 = vpow.pop %v443
      %v445 = vsub.f32 %v413, %v441
      %v446 = vmul.f32 %v445, 1.442695
      %v447 = vpow.pop %v446
      %v448 = vsel %vm414, %v444, 0.0
      %449 = vadd.xlane.f32.xlu0 %v448
      %v450 = vpop.xlane.xlu0 %449
      %v451 = vsel %vm414, %v447, 0.0
      %452 = vadd.xlane.f32.xlu0 %v451
      %v453 = vpop.xlane.xlu0 %452
      %v454 = vadd.f32 %v450, %v453
      %v455 = vpack.c.bf16 %v444, %v444
      %v456 = vpack.c.bf16 %v447, %v447
      %v458 = vsel %vm414, %v456, 0
      %vm460 = vcmask 1043456
      %v462 = vsel %vm460, %v387, 0
      %464 = vmatpush.bf16.msra.mxu0 0
      %465 = vmatpush.bf16.msra.mxu0 0
      %466 = vmatpush.bf16.msra.mxu0 0
      %467 = vmatpush.bf16.msra.mxu0 0
      %468 = vmatpush.bf16.msra.mxu0 0
      %469 = vmatpush.bf16.msra.mxu0 0
      %470 = vmatpush.bf16.msra.mxu0 0
      %471 = vmatpush.bf16.msra.mxu0 %v462
      %472 = vmatmul.bf16.gmra.mxu0 %v458
      %v473 = vpop.f32.mrf.mxu0
      %v474 = vadd.f32 0.0, %v473
      %v475 = vpop.f32.mrf.mxu0
      %476 = vdwg.mxu0
      %v478 = vsel %vm414, %v455, 0
      %v481 = vsel %vm460, %v421, 0
      %483 = vmatpush.bf16.msra.mxu0 0
      %484 = vmatpush.bf16.msra.mxu0 0
      %485 = vmatpush.bf16.msra.mxu0 0
      %486 = vmatpush.bf16.msra.mxu0 0
      %487 = vmatpush.bf16.msra.mxu0 0
      %488 = vmatpush.bf16.msra.mxu0 0
      %489 = vmatpush.bf16.msra.mxu0 0
      %490 = vmatpush.bf16.msra.mxu0 %v481
      %491 = vmatmul.bf16.gmra.mxu0 %v478
      %v492 = vpop.f32.mrf.mxu0
      %v493 = vadd.f32 %v474, %v492
      %v494 = vpop.f32.mrf.mxu0
      %495 = vdwg.mxu0
      %v496 = vrcp.pop %v454
      %v497 = vmul.f32 %v454, %v496
      %v498 = vsub.f32 1.0, %v497
      %v499 = vmul.f32 %v496, %v498
      %v500 = vadd.f32 %v496, %v499
      %vm501 = vweird.f32 %v454
      %vm502 = vweird.f32 %v496
      %vm503 = vmor %vm501, %vm502
      %v504 = vsel %vm503, %v496, %v500
      %v505 = vand.u32 2147483647, %v454
      %vm506 = vcmp.eq.f32.partialorder %v505, 8.507059e+37
      %v507 = vand.u32 %v454, 2147483648
      %v508 = vor.u32 1.1754944e-38, %v507
      %v509 = vsel %vm506, %v508, %v504
      %v510 = vmul.f32 %v493, %v509
      %v511 = vpack.c.bf16 %v510, %v510
      %vm512 = vcmask 125952
      %513 = vst.msk [vmem:[%s379] sm:$0xf] %vm512, %v511
      %p514 = scmp.lt.s32.totalorder %s20, 1
      %s515 = scalar_select %p514, %s20, 1
      %p516 = scmp.lt.s32.totalorder %s21, 1
      %s517 = scalar_select %p516, %s21, 1
      %s518 = smul.addr %s515, 2
      %s519 = sadd.s32 %s517, %s518
      %s520 = smul.addr %s519, 4
      %s521 = scalar_lea.vmem %s5, %s520
      // Predicated region
      $region41: #{onnx_decoder_forward.12} parent=39 // pred_check
        %p522 = pneg %p188
      $region42: #{onnx_decoder_forward.12} parent=39 // pred_check_branch
        %524 = sbr.rel (%p522) target = $region44
      $region43: #{onnx_decoder_forward.12} parent=39 // pred_region
        _
      $region44: #{onnx_decoder_forward.12} parent=39 // pred_fallthru
        _
    $region40: #{onnx_decoder_forward.12} parent=5 // pred_fallthru
      _
    %p525 = scmp.le.s32.totalorder 2, %s11
    // Predicated region
    $region45: #{onnx_decoder_forward.12} parent=5 // pred_check
      %p526 = pneg %p525
    $region46: #{onnx_decoder_forward.12} parent=5 // pred_check_branch
      %528 = sbr.rel (%p526) target = $region48
    $region47: #{onnx_decoder_forward.12} parent=5 // pred_region
      %s529 = ssub.s32 %s11, 2
      // Predicated region
      $region49: #{onnx_decoder_forward.12} parent=47 // pred_check
        %p530 = pneg %p194
      $region50: #{onnx_decoder_forward.12} parent=47 // pred_check_branch
        %532 = sbr.rel (%p530) target = $region52
      $region51: #{onnx_decoder_forward.12} parent=47 // pred_region
        %p533 = scmp.lt.s32.totalorder %s22, 1
        %s534 = scalar_select %p533, %s22, 1
        %p535 = scmp.lt.s32.totalorder %s23, 1
        %s536 = scalar_select %p535, %s23, 1
        %s537 = smul.addr %s534, 2
        %s538 = sadd.s32 %s536, %s537
        %s539 = smul.addr %s538, 4
        %s540 = scalar_lea.vmem %s5, %s539
      $region52: #{onnx_decoder_forward.12} parent=47 // pred_fallthru
        _
    $region48: #{onnx_decoder_forward.12} parent=5 // pred_fallthru
      _
  $region6: #{onnx_decoder_forward.12} parent=0 // loop_footer
    %s15 = sadd.s32 1, %s11
  $region7: #{onnx_decoder_forward.12} parent=0 // loop_footer_branch
    %10 = sbr.rel target = $region3
  $region8: #{onnx_decoder_forward.12} parent=0 // loop_exit
    _

// kernel: onnx_decoder_forward.13
$region0: #{onnx_decoder_forward.13}
  #allocation0 [shape = 'u32[]', space=smem, size = 0x4, offset = 0x4, fixed_abs, tag = 'smem constant byte address 0x4 - core index']
  #allocation1 [shape = 'u32[72,128]{1,0:T(1,128)}', space=vmem, size = 0x9000, scoped, tag = 'internal scratch']
  %s0 = inlined_call_operand.vmem [shape: bf16[16,32], index: 0, kind: input, shape index: {}]
  %s1 = inlined_call_operand.vmem [shape: bf16[32,32], index: 1, kind: input, shape index: {}]
  %s2 = inlined_call_operand.vmem [shape: f32[1,32], index: 2, kind: input, shape index: {}]
  %s3 = inlined_call_operand.vmem [shape: f32[16,32], index: 3, kind: input, shape index: {}]
  %s4 = inlined_call_operand.vmem [shape: f32[16,32], index: 4, kind: output, shape index: {}]
  %s5 = sld [smem:[#allocation0]]
  $region34: #{onnx_decoder_forward.13} parent=0
    _
  %s7 = ssub.s32 1, %s5
  %s8 = scalar_select 0, %s7, %s5
  // Predicated region
  $region2: #{onnx_decoder_forward.13} parent=0 // pred_check
    _
  $region3: #{onnx_decoder_forward.13} parent=0 // pred_check_branch
    %10 = sbr.rel (0) target = $region5
  $region4: #{onnx_decoder_forward.13} parent=0 // pred_region
    _
  $region5: #{onnx_decoder_forward.13} parent=0 // pred_fallthru
    _
  // Predicated region
  $region6: #{onnx_decoder_forward.13} parent=0 // pred_check
    _
  $region7: #{onnx_decoder_forward.13} parent=0 // pred_check_branch
    %12 = sbr.rel (0) target = $region9
  $region8: #{onnx_decoder_forward.13} parent=0 // pred_region
    _
  $region9: #{onnx_decoder_forward.13} parent=0 // pred_fallthru
    _
  // Predicated region
  $region10: #{onnx_decoder_forward.13} parent=0 // pred_check
    _
  $region11: #{onnx_decoder_forward.13} parent=0 // pred_check_branch
    %14 = sbr.rel (0) target = $region13
  $region12: #{onnx_decoder_forward.13} parent=0 // pred_region
    _
  $region13: #{onnx_decoder_forward.13} parent=0 // pred_fallthru
    _
  // Predicated region
  $region14: #{onnx_decoder_forward.13} parent=0 // pred_check
    _
  $region15: #{onnx_decoder_forward.13} parent=0 // pred_check_branch
    %16 = sbr.rel (0) target = $region17
  $region16: #{onnx_decoder_forward.13} parent=0 // pred_region
    _
  $region17: #{onnx_decoder_forward.13} parent=0 // pred_fallthru
    _
  %p18 = scmp.eq.s32.totalorder 0, 0
  // Predicated region
  $region18: #{onnx_decoder_forward.13} parent=0 // pred_check
    %p19 = pneg %p18
  $region19: #{onnx_decoder_forward.13} parent=0 // pred_check_branch
    %21 = sbr.rel (%p19) target = $region21
  $region20: #{onnx_decoder_forward.13} parent=0 // pred_region
    %vm22 = vcmask 261120
    %23 = vst.msk [vmem:[%s4] sm:$0xff] %vm22, 0.0
    %24 = vst.msk [vmem:[%s4 + $0x8] sm:$0xff] %vm22, 0.0
  $region21: #{onnx_decoder_forward.13} parent=0 // pred_fallthru
    _
  %v25 = vld [vmem:[%s4] sm:$0xff]
  %v26 = vld [vmem:[%s4 + $0x8] sm:$0xff]
  %v27 = vld [vmem:[%s0] sm:$0xf]
  %v28 = vld [vmem:[%s0 + $0x4] sm:$0xf]
  %v29 = vld [vmem:[%s1] sm:$0xf]
  %v30 = vld [vmem:[%s1 + $0x4] sm:$0xf]
  %v31 = vld [vmem:[%s1 + $0x8] sm:$0xf]
  %v32 = vld [vmem:[%s1 + $0xc] sm:$0xf]
  %v35 = vunpack.c.l.b16 %v27
  %v36 = vunpack.c.l.b16 %v28
  %v37 = vpack.c.b16 %v36, %v35
  %v42 = vunpack.c.l.b16 %v29
  %v43 = vunpack.c.l.b16 %v30
  %v44 = vunpack.c.l.b16 %v31
  %v45 = vunpack.c.l.b16 %v32
  %v46 = vpack.c.b16 %v43, %v42
  %v47 = vpack.c.b16 %v45, %v44
  %vm50 = vcmask 261120
  %v52 = vsel %vm50, %v37, 0
  %54 = vmatpush.bf16.msra.mxu0 0
  %55 = vmatpush.bf16.msra.mxu0 0
  %56 = vmatpush.bf16.msra.mxu0 0
  %57 = vmatpush.bf16.msra.mxu0 0
  %58 = vmatpush.bf16.msra.mxu0 0
  %59 = vmatpush.bf16.msra.mxu0 0
  %60 = vmatpush.bf16.msra.mxu0 %v47
  %61 = vmatpush.bf16.msra.mxu0 %v46
  %62 = vmatmul.bf16.gmra.mxu0 %v52
  %v63 = vpop.f32.mrf.mxu0
  %v64 = vadd.f32 0.0, %v63
  %v65 = vpop.f32.mrf.mxu0
  %v66 = vadd.f32 0.0, %v65
  %67 = vdwg.mxu0
  %v68 = vadd.f32 %v25, %v64
  %v69 = vadd.f32 %v26, %v66
  %70 = vst.msk [vmem:[%s4] sm:$0xff] %vm50, %v68
  %71 = vst.msk [vmem:[%s4 + $0x8] sm:$0xff] %vm50, %v69
  // Predicated region
  $region22: #{onnx_decoder_forward.13} parent=0 // pred_check
    %p72 = pneg %p18
  $region23: #{onnx_decoder_forward.13} parent=0 // pred_check_branch
    %74 = sbr.rel (%p72) target = $region25
  $region24: #{onnx_decoder_forward.13} parent=0 // pred_region
    %v75 = vld [vmem:[%s4] sm:$0xff]
    %v76 = vld [vmem:[%s4 + $0x8] sm:$0xff]
    %v77 = vld [vmem:[%s2] sm:$0x1]
    %v78 = vld [vmem:[%s3] sm:$0xff]
    %v79 = vld [vmem:[%s3 + $0x8] sm:$0xff]
    %v81 = vperm.slane %v77, 0
    %v83 = vadd.f32 %v81, %v78
    %v84 = vadd.f32 %v81, %v79
    %v85 = vadd.f32 %v75, %v83
    %v86 = vadd.f32 %v76, %v84
    %87 = vst.msk [vmem:[%s4] sm:$0xff] %vm50, %v85
    %88 = vst.msk [vmem:[%s4 + $0x8] sm:$0xff] %vm50, %v86
  $region25: #{onnx_decoder_forward.13} parent=0 // pred_fallthru
    _
  // Predicated region
  $region26: #{onnx_decoder_forward.13} parent=0 // pred_check
    _
  $region27: #{onnx_decoder_forward.13} parent=0 // pred_check_branch
    %90 = sbr.rel (0) target = $region29
  $region28: #{onnx_decoder_forward.13} parent=0 // pred_region
    _
  $region29: #{onnx_decoder_forward.13} parent=0 // pred_fallthru
    _
  // Predicated region
  $region30: #{onnx_decoder_forward.13} parent=0 // pred_check
    _
  $region31: #{onnx_decoder_forward.13} parent=0 // pred_check_branch
    %92 = sbr.rel (0) target = $region33
  $region32: #{onnx_decoder_forward.13} parent=0 // pred_region
    _
  $region33: #{onnx_decoder_forward.13} parent=0 // pred_fallthru
    _

// kernel: onnx_decoder_forward.15
$region0: #{onnx_decoder_forward.15}
  #allocation0 [shape = 'u32[]', space=smem, size = 0x4, offset = 0x4, fixed_abs, tag = 'smem constant byte address 0x4 - core index']
  #allocation1 [shape = 'u32[72,128]{1,0:T(1,128)}', space=vmem, size = 0x9000, scoped, tag = 'internal scratch']
  %s0 = inlined_call_operand.vmem [shape: bf16[16,128], index: 0, kind: input, shape index: {}]
  %s1 = inlined_call_operand.vmem [shape: bf16[128,32], index: 1, kind: input, shape index: {}]
  %s2 = inlined_call_operand.vmem [shape: f32[1,32], index: 2, kind: input, shape index: {}]
  %s3 = inlined_call_operand.vmem [shape: f32[16,32], index: 3, kind: input, shape index: {}]
  %s4 = inlined_call_operand.vmem [shape: f32[16,32], index: 4, kind: output, shape index: {}]
  %s5 = sld [smem:[#allocation0]]
  $region34: #{onnx_decoder_forward.15} parent=0
    _
  %s7 = ssub.s32 1, %s5
  %s8 = scalar_select 0, %s7, %s5
  // Predicated region
  $region2: #{onnx_decoder_forward.15} parent=0 // pred_check
    _
  $region3: #{onnx_decoder_forward.15} parent=0 // pred_check_branch
    %10 = sbr.rel (0) target = $region5
  $region4: #{onnx_decoder_forward.15} parent=0 // pred_region
    _
  $region5: #{onnx_decoder_forward.15} parent=0 // pred_fallthru
    _
  // Predicated region
  $region6: #{onnx_decoder_forward.15} parent=0 // pred_check
    _
  $region7: #{onnx_decoder_forward.15} parent=0 // pred_check_branch
    %12 = sbr.rel (0) target = $region9
  $region8: #{onnx_decoder_forward.15} parent=0 // pred_region
    _
  $region9: #{onnx_decoder_forward.15} parent=0 // pred_fallthru
    _
  // Predicated region
  $region10: #{onnx_decoder_forward.15} parent=0 // pred_check
    _
  $region11: #{onnx_decoder_forward.15} parent=0 // pred_check_branch
    %14 = sbr.rel (0) target = $region13
  $region12: #{onnx_decoder_forward.15} parent=0 // pred_region
    _
  $region13: #{onnx_decoder_forward.15} parent=0 // pred_fallthru
    _
  // Predicated region
  $region14: #{onnx_decoder_forward.15} parent=0 // pred_check
    _
  $region15: #{onnx_decoder_forward.15} parent=0 // pred_check_branch
    %16 = sbr.rel (0) target = $region17
  $region16: #{onnx_decoder_forward.15} parent=0 // pred_region
    _
  $region17: #{onnx_decoder_forward.15} parent=0 // pred_fallthru
    _
  %p17 = scmp.eq.s32.totalorder 0, 0
  // Predicated region
  $region18: #{onnx_decoder_forward.15} parent=0 // pred_check
    %p18 = pneg %p17
  $region19: #{onnx_decoder_forward.15} parent=0 // pred_check_branch
    %20 = sbr.rel (%p18) target = $region21
  $region20: #{onnx_decoder_forward.15} parent=0 // pred_region
    %vm21 = vcmask 261120
    %22 = vst.msk [vmem:[%s4] sm:$0xff] %vm21, 0.0
    %23 = vst.msk [vmem:[%s4 + $0x8] sm:$0xff] %vm21, 0.0
  $region21: #{onnx_decoder_forward.15} parent=0 // pred_fallthru
    _
  %v24 = vld [vmem:[%s4] sm:$0xff]
  %v25 = vld [vmem:[%s4 + $0x8] sm:$0xff]
  %v26 = vld [vmem:[%s0] sm:$0xf]
  %v27 = vld [vmem:[%s0 + $0x4] sm:$0xf]
  %v28 = vld [vmem:[%s1] sm:$0xf]
  %v29 = vld [vmem:[%s1 + $0x4] sm:$0xf]
  %v30 = vld [vmem:[%s1 + $0x8] sm:$0xf]
  %v31 = vld [vmem:[%s1 + $0xc] sm:$0xf]
  %v32 = vld [vmem:[%s1 + $0x10] sm:$0xf]
  %v33 = vld [vmem:[%s1 + $0x14] sm:$0xf]
  %v34 = vld [vmem:[%s1 + $0x18] sm:$0xf]
  %v35 = vld [vmem:[%s1 + $0x1c] sm:$0xf]
  %v36 = vld [vmem:[%s1 + $0x20] sm:$0xf]
  %v37 = vld [vmem:[%s1 + $0x24] sm:$0xf]
  %v38 = vld [vmem:[%s1 + $0x28] sm:$0xf]
  %v39 = vld [vmem:[%s1 + $0x2c] sm:$0xf]
  %v40 = vld [vmem:[%s1 + $0x30] sm:$0xf]
  %v41 = vld [vmem:[%s1 + $0x34] sm:$0xf]
  %v42 = vld [vmem:[%s1 + $0x38] sm:$0xf]
  %v43 = vld [vmem:[%s1 + $0x3c] sm:$0xf]
  %v46 = vunpack.c.l.b16 %v26
  %v47 = vunpack.c.l.b16 %v27
  %v48 = vpack.c.b16 %v47, %v46
  %v66 = vunpack.c.l.b16 %v28
  %v67 = vunpack.c.l.b16 %v29
  %v68 = vunpack.c.l.b16 %v30
  %v69 = vunpack.c.l.b16 %v31
  %v70 = vunpack.c.l.b16 %v32
  %v71 = vunpack.c.l.b16 %v33
  %v72 = vunpack.c.l.b16 %v34
  %v73 = vunpack.c.l.b16 %v35
  %v74 = vunpack.c.l.b16 %v36
  %v75 = vunpack.c.l.b16 %v37
  %v76 = vunpack.c.l.b16 %v38
  %v77 = vunpack.c.l.b16 %v39
  %v78 = vunpack.c.l.b16 %v40
  %v79 = vunpack.c.l.b16 %v41
  %v80 = vunpack.c.l.b16 %v42
  %v81 = vunpack.c.l.b16 %v43
  %v82 = vpack.c.b16 %v67, %v66
  %v83 = vpack.c.b16 %v69, %v68
  %v84 = vpack.c.b16 %v71, %v70
  %v85 = vpack.c.b16 %v73, %v72
  %v86 = vpack.c.b16 %v75, %v74
  %v87 = vpack.c.b16 %v77, %v76
  %v88 = vpack.c.b16 %v79, %v78
  %v89 = vpack.c.b16 %v81, %v80
  %98 = vmatpush.bf16.msra.mxu0 %v89
  %99 = vmatpush.bf16.msra.mxu0 %v88
  %100 = vmatpush.bf16.msra.mxu0 %v87
  %101 = vmatpush.bf16.msra.mxu0 %v86
  %102 = vmatpush.bf16.msra.mxu0 %v85
  %103 = vmatpush.bf16.msra.mxu0 %v84
  %104 = vmatpush.bf16.msra.mxu0 %v83
  %105 = vmatpush.bf16.msra.mxu0 %v82
  %106 = vmatmul.bf16.gmra.mxu0 %v48
  %v107 = vpop.f32.mrf.mxu0
  %v108 = vadd.f32 0.0, %v107
  %v109 = vpop.f32.mrf.mxu0
  %v110 = vadd.f32 0.0, %v109
  %111 = vdwg.mxu0
  %v112 = vadd.f32 %v24, %v108
  %v113 = vadd.f32 %v25, %v110
  %vm114 = vcmask 261120
  %115 = vst.msk [vmem:[%s4] sm:$0xff] %vm114, %v112
  %116 = vst.msk [vmem:[%s4 + $0x8] sm:$0xff] %vm114, %v113
  // Predicated region
  $region22: #{onnx_decoder_forward.15} parent=0 // pred_check
    %p117 = pneg %p17
  $region23: #{onnx_decoder_forward.15} parent=0 // pred_check_branch
    %119 = sbr.rel (%p117) target = $region25
  $region24: #{onnx_decoder_forward.15} parent=0 // pred_region
    %v120 = vld [vmem:[%s4] sm:$0xff]
    %v121 = vld [vmem:[%s4 + $0x8] sm:$0xff]
    %v122 = vld [vmem:[%s2] sm:$0x1]
    %v123 = vld [vmem:[%s3] sm:$0xff]
    %v124 = vld [vmem:[%s3 + $0x8] sm:$0xff]
    %v126 = vperm.slane %v122, 0
    %v128 = vadd.f32 %v126, %v123
    %v129 = vadd.f32 %v126, %v124
    %v130 = vadd.f32 %v120, %v128
    %v131 = vadd.f32 %v121, %v129
    %132 = vst.msk [vmem:[%s4] sm:$0xff] %vm114, %v130
    %133 = vst.msk [vmem:[%s4 + $0x8] sm:$0xff] %vm114, %v131
  $region25: #{onnx_decoder_forward.15} parent=0 // pred_fallthru
    _
  // Predicated region
  $region26: #{onnx_decoder_forward.15} parent=0 // pred_check
    _
  $region27: #{onnx_decoder_forward.15} parent=0 // pred_check_branch
    %135 = sbr.rel (0) target = $region29
  $region28: #{onnx_decoder_forward.15} parent=0 // pred_region
    _
  $region29: #{onnx_decoder_forward.15} parent=0 // pred_fallthru
    _
  // Predicated region
  $region30: #{onnx_decoder_forward.15} parent=0 // pred_check
    _
  $region31: #{onnx_decoder_forward.15} parent=0 // pred_check_branch
    %137 = sbr.rel (0) target = $region33
  $region32: #{onnx_decoder_forward.15} parent=0 // pred_region
    _
  $region33: #{onnx_decoder_forward.15} parent=0 // pred_fallthru
    _

// kernel: onnx_decoder_forward.21
$region0: #{onnx_decoder_forward.21}
  #allocation0 [shape = 'u32[]', space=smem, size = 0x4, offset = 0x4, fixed_abs, tag = 'smem constant byte address 0x4 - core index']
  #allocation1 [shape = 'u32[72,128]{1,0:T(1,128)}', space=vmem, size = 0x9000, scoped, tag = 'internal scratch']
  #allocation2 [shape = 'bf16[16,32]{1,0:T(8,128)(2,1)}', space=vmem, size = 0x1000, scoped, tag = 'scratch operand']
  %s0 = inlined_call_operand.vmem [shape: f32[16,32], index: 0, kind: input, shape index: {}]
  %s1 = inlined_call_operand.vmem [shape: f32[1,32], index: 1, kind: input, shape index: {}]
  %s2 = inlined_call_operand.vmem [shape: f32[1,32], index: 2, kind: input, shape index: {}]
  %s3 = inlined_call_operand.vmem [shape: bf16[32,128], index: 3, kind: input, shape index: {}]
  %s4 = inlined_call_operand.vmem [shape: f32[1,128], index: 4, kind: input, shape index: {}]
  %s5 = inlined_call_operand.hbm [shape: f32[16,128], index: 5, kind: output, shape index: {}]
  %s6 = sld [smem:[#allocation0]]
  $region34: #{onnx_decoder_forward.21} parent=0
    _
  %s8 = ssub.s32 1, %s6
  %s9 = scalar_select 0, %s8, %s6
  $region1: #{onnx_decoder_forward.21} parent=0
    #allocation3 [shape = 'u8[8192]{0}', space=vmem, size = 0x2000, scoped, tag = 'output window, operand 0, single buffered']
    #allocation4 [shape = 's32[1]{0}', space=sflag, size = 0x4, scoped, tag = 'scoped memory for onnx_decoder_forward.21']
    %10 = vsyncpa [#allocation4], 0
    // Predicated region
    $region2: #{onnx_decoder_forward.21} parent=1 // pred_check
      _
    $region3: #{onnx_decoder_forward.21} parent=1 // pred_check_branch
      %12 = sbr.rel (0) target = $region5
    $region4: #{onnx_decoder_forward.21} parent=1 // pred_region
      _
    $region5: #{onnx_decoder_forward.21} parent=1 // pred_fallthru
      _
    // Predicated region
    $region6: #{onnx_decoder_forward.21} parent=1 // pred_check
      _
    $region7: #{onnx_decoder_forward.21} parent=1 // pred_check_branch
      %14 = sbr.rel (0) target = $region9
    $region8: #{onnx_decoder_forward.21} parent=1 // pred_region
      _
    $region9: #{onnx_decoder_forward.21} parent=1 // pred_fallthru
      _
    // Predicated region
    $region10: #{onnx_decoder_forward.21} parent=1 // pred_check
      _
    $region11: #{onnx_decoder_forward.21} parent=1 // pred_check_branch
      %16 = sbr.rel (0) target = $region13
    $region12: #{onnx_decoder_forward.21} parent=1 // pred_region
      _
    $region13: #{onnx_decoder_forward.21} parent=1 // pred_fallthru
      _
    // Predicated region
    $region14: #{onnx_decoder_forward.21} parent=1 // pred_check
      _
    $region15: #{onnx_decoder_forward.21} parent=1 // pred_check_branch
      %18 = sbr.rel (0) target = $region17
    $region16: #{onnx_decoder_forward.21} parent=1 // pred_region
      _
    $region17: #{onnx_decoder_forward.21} parent=1 // pred_fallthru
      _
    // Predicated region
    $region18: #{onnx_decoder_forward.21} parent=1 // pred_check
      _
    $region19: #{onnx_decoder_forward.21} parent=1 // pred_check_branch
      %20 = sbr.rel (0) target = $region21
    $region20: #{onnx_decoder_forward.21} parent=1 // pred_region
      _
    $region21: #{onnx_decoder_forward.21} parent=1 // pred_fallthru
      _
    %p22 = scmp.eq.s32.totalorder 0, 0
    // Predicated region
    $region22: #{onnx_decoder_forward.21} parent=1 // pred_check
      %p23 = pneg %p22
    $region23: #{onnx_decoder_forward.21} parent=1 // pred_check_branch
      %25 = sbr.rel (%p23) target = $region25
    $region24: #{onnx_decoder_forward.21} parent=1 // pred_region
      %v26 = vld [vmem:[%s0] sm:$0xff]
      %v27 = vld [vmem:[%s0 + $0x8] sm:$0xff]
      %vm28 = vcmask 261120
      %v29 = vsel %vm28, %v26, 0.0
      %30 = vadd.xlane.f32.xlu0 %v29
      %v31 = vpop.xlane.xlu0 %30
      %v32 = vsel %vm28, %v27, 0.0
      %33 = vadd.xlane.f32.xlu0 %v32
      %v34 = vpop.xlane.xlu0 %33
      %v35 = vrcp.pop 32.0
      %v36 = vmul.f32 32.0, %v35
      %v37 = vsub.f32 1.0, %v36
      %v38 = vmul.f32 %v35, %v37
      %v39 = vadd.f32 %v35, %v38
      %vm40 = vweird.f32 %v35
      %v41 = vsel %vm40, %v35, %v39
      %v42 = vmul.f32 %v31, %v41
      %v43 = vmul.f32 %v34, %v41
      %v44 = vsub.f32 %v26, %v42
      %v45 = vsub.f32 %v27, %v43
      %v46 = vmul.f32 %v44, %v44
      %v47 = vmul.f32 %v45, %v45
      %v48 = vsel %vm28, %v46, 0.0
      %49 = vadd.xlane.f32.xlu0 %v48
      %v50 = vpop.xlane.xlu0 %49
      %v51 = vsel %vm28, %v47, 0.0
      %52 = vadd.xlane.f32.xlu0 %v51
      %v53 = vpop.xlane.xlu0 %52
      %v54 = vmul.f32 %v50, %v41
      %v55 = vmul.f32 %v53, %v41
      %v56 = vadd.f32 %v54, 1e-05
      %v57 = vadd.f32 %v55, 1e-05
      %v58 = vrsqrt.pop %v56
      %v59 = vmul.f32 %v58, %v56
      %v60 = vmul.f32 %v59, %v58
      %v61 = vmul.f32 0.5, %v60
      %v62 = vsub.f32 1.5, %v61
      %v63 = vmul.f32 %v58, %v62
      %vm64 = vweird.f32 %v56
      %vm65 = vweird.f32 %v58
      %vm66 = vmor %vm64, %vm65
      %v67 = vsel %vm66, %v58, %v63
      %v68 = vrsqrt.pop %v57
      %v69 = vmul.f32 %v68, %v57
      %v70 = vmul.f32 %v69, %v68
      %v71 = vmul.f32 0.5, %v70
      %v72 = vsub.f32 1.5, %v71
      %v73 = vmul.f32 %v68, %v72
      %vm74 = vweird.f32 %v57
      %vm75 = vweird.f32 %v68
      %vm76 = vmor %vm74, %vm75
      %v77 = vsel %vm76, %v68, %v73
      %v78 = vmul.f32 %v44, %v67
      %v79 = vmul.f32 %v45, %v77
      %v80 = vld [vmem:[%s1] sm:$0x1]
      %v82 = vperm.slane %v80, 0
      %v84 = vmul.f32 %v78, %v82
      %v85 = vmul.f32 %v79, %v82
      %v86 = vld [vmem:[%s2] sm:$0x1]
      %v88 = vperm.slane %v86, 0
      %v90 = vadd.f32 %v84, %v88
      %v91 = vadd.f32 %v85, %v88
      %v92 = vpack.c.bf16 %v90, %v90
      %v93 = vpack.c.bf16 %v91, %v91
      %vm94 = vcmask 257024
      %95 = vst.msk [vmem:[#allocation2] sm:$0xf] %vm94, %v92
      %96 = vst.msk [vmem:[#allocation2 + $0x4] sm:$0xf] %vm94, %v93
    $region25: #{onnx_decoder_forward.21} parent=1 // pred_fallthru
      _
    %v97 = vld [vmem:[#allocation2] sm:$0xf]
    %v98 = vld [vmem:[#allocation2 + $0x4] sm:$0xf]
    %v99 = vld [vmem:[%s3] sm:$0xf]
    %v100 = vld [vmem:[%s3 + $0x4] sm:$0xf]
    %v101 = vld [vmem:[%s3 + $0x8] sm:$0xf]
    %v102 = vld [vmem:[%s3 + $0xc] sm:$0xf]
    %v103 = vld [vmem:[%s4] sm:$0x1]
    %v105 = vperm.slane %v103, 0
    %v109 = vunpack.c.l.b16 %v97
    %v110 = vunpack.c.l.b16 %v98
    %v111 = vpack.c.b16 %v110, %v109
    %v116 = vunpack.c.l.b16 %v99
    %v117 = vunpack.c.l.b16 %v100
    %v118 = vunpack.c.l.b16 %v101
    %v119 = vunpack.c.l.b16 %v102
    %v120 = vpack.c.b16 %v117, %v116
    %v121 = vpack.c.b16 %v119, %v118
    %vm124 = vcmask 261120
    %v126 = vsel %vm124, %v111, 0
    %128 = vmatpush.bf16.msra.mxu0 0
    %129 = vmatpush.bf16.msra.mxu0 0
    %130 = vmatpush.bf16.msra.mxu0 0
    %131 = vmatpush.bf16.msra.mxu0 0
    %132 = vmatpush.bf16.msra.mxu0 0
    %133 = vmatpush.bf16.msra.mxu0 0
    %134 = vmatpush.bf16.msra.mxu0 %v121
    %135 = vmatpush.bf16.msra.mxu0 %v120
    %136 = vmatmul.bf16.gmra.mxu0 %v126
    %v137 = vpop.f32.mrf.mxu0
    %v138 = vadd.f32 %v105, %v137
    %v139 = vpop.f32.mrf.mxu0
    %v140 = vadd.f32 %v105, %v139
    %141 = vdwg.mxu0
    %142 = vst [vmem:[#allocation3] sm:$0xff] %v138
    %143 = vst [vmem:[#allocation3 + $0x8] sm:$0xff] %v140
    // Predicated region
    $region26: #{onnx_decoder_forward.21} parent=1 // pred_check
      _
    $region27: #{onnx_decoder_forward.21} parent=1 // pred_check_branch
      %145 = sbr.rel (0) target = $region29
    $region28: #{onnx_decoder_forward.21} parent=1 // pred_region
      %147 = vsyncadd [#allocation4], 0
      %s148 = sshll.u32 [#allocation3], 4
      %s149 = int_to_ptr.vmem [resolvable:$true] %s148
      %s150 = sshll.u32 %s5, 4
      %s151 = int_to_ptr.hbm [resolvable:$true] %s150
      %156 = dma.vmem_to_hbm [thread:$0]  %s149, 256, %s151, [#allocation4], 128, 128, 8
    $region29: #{onnx_decoder_forward.21} parent=1 // pred_fallthru
      _
    // Predicated region
    $region30: #{onnx_decoder_forward.21} parent=1 // pred_check
      _
    $region31: #{onnx_decoder_forward.21} parent=1 // pred_check_branch
      %158 = sbr.rel (0) target = $region33
    $region32: #{onnx_decoder_forward.21} parent=1 // pred_region
      %160 = dma.done [#allocation4], 256
    $region33: #{onnx_decoder_forward.21} parent=1 // pred_fallthru
      _
    %161 = vsyncpa [#allocation4], 1

</llo_original>
